<compile_context>
chip_gen: v7x
topology: tpu7x:2x2x1
jax: 0.10.0
libtpu: 0.0.40
codegen_flags: <defaults>
</compile_context>

<pallas_src>
import numpy as np
import jax
import jax.numpy as jnp
from jax.experimental import pallas as pl
from jax.experimental.pallas import tpu as pltpu

EMBED_DIM = 128
N_HEADS = 8
HEAD_DEPTH = EMBED_DIM // N_HEADS
CLIP = 10.0
INF = 1e10
MHA_SCALE = float(np.sqrt(HEAD_DEPTH))
SHA_SCALE = float(np.sqrt(EMBED_DIM))
TB_CAP = 64          # max batch elements per grid step (re-derive for v7x VMEM if pushed up)


def _round_up(x, m):
    return -(-x // m) * m


def decoder_step_kernel(ne_ref, ge_ref, sc_ref, mask_ref,
                        wkvk_ref, wqf_ref, wout_ref, wqs_ref, sel_ref, selT_ref,
                        out_ref):
    f32 = jnp.float32
    TB, N, D = ne_ref.shape
    H = sel_ref.shape[1]

    ne_flat = ne_ref[...].reshape(TB * N, D)              # (TB*N, D)   free view (N % 8 == 0)
    ge = ge_ref[...]                                      # (TB, D)
    sc = sc_ref[...]                                      # (TB, Dc)
    mask = mask_ref[...]                                  # (TB, N)     > 0  => masked

    # ---- compute_static: fused K1 | V | K2 projection, one wide MXU matmul ----
    kvk = jnp.dot(ne_flat, wkvk_ref[...], preferred_element_type=f32)    # (TB*N, 3D)
    K1 = kvk[:, :D].reshape(TB, N, D)
    V = kvk[:, D:2 * D].reshape(TB, N, D)
    K2 = kvk[:, 2 * D:].reshape(TB, N, D)

    # ---- compute_dynamic ----
    Qf = jnp.dot(ge, wqf_ref[...], preferred_element_type=f32)           # (TB, D)
    Qs = jnp.dot(sc, wqs_ref[...], preferred_element_type=f32)           # (TB, D)
    Q1 = Qf + Qs                                                         # (TB, D)

    # Multi-head attention (query length 1 per batch element).  Per-head dot
    # products via a one-hot (D, H) selection matmul keep everything lane-dense.
    prod = K1 * Q1[:, None, :]                                           # (TB, N, D)
    scores = jnp.dot(prod.reshape(TB * N, D), sel_ref[...],
                     preferred_element_type=f32).reshape(TB, N, H)
    scores = scores * (1.0 / MHA_SCALE)
    scores = jnp.where(mask[:, :, None] > 0.0, -INF, scores)
    s_max = jnp.max(scores, axis=1, keepdims=True)                       # (TB, 1, H)
    e = jnp.exp(scores - s_max)                                          # (TB, N, H)
    denom = jnp.sum(e, axis=1, keepdims=True)                            # (TB, 1, H)
    probs = e * pl.reciprocal(denom, approx=True)                        # (TB, N, H)
    # Broadcast per-head prob back to full feature width and contract over nodes.
    probs_full = jnp.dot(probs.reshape(TB * N, H), selT_ref[...],
                         preferred_element_type=f32).reshape(TB, N, D)   # (TB, N, D)
    attn = jnp.sum(probs_full * V, axis=1)                               # (TB, D)

    Q2 = jnp.dot(attn, wout_ref[...], preferred_element_type=f32)        # (TB, D)

    # Single-head attention, return_logits=True, clip=10 (no materialized K2^T).
    logits = jnp.sum(K2 * Q2[:, None, :], axis=-1) * (1.0 / SHA_SCALE)   # (TB, N)
    logits = CLIP * jnp.tanh(logits)
    out_ref[...] = jnp.where(mask > 0.0, -INF, logits)


@jax.jit
def decoder_step(node_emb, graph_emb, step_ctx, mask_f, params):
    """node_emb (B,N,D), graph_emb (B,1,D), step_ctx (B,1,D+2), mask_f (B,1,N) float (1==masked)."""
    B, N, D = node_emb.shape
    Dc = step_ctx.shape[-1]
    H = params["sel"].shape[-1]

    # Pad the node dim to the f32 sublane tile and block the batch dimension so
    # every grid step feeds MXU-shaped (TB*N_pad, D) x (D, 3D) matmuls.
    N_pad = _round_up(N, 8)
    TB = min(TB_CAP, _round_up(B, 8))
    B_pad = _round_up(B, TB)

    ne = jnp.zeros((B_pad, N_pad, D), node_emb.dtype).at[:B, :N, :].set(node_emb)
    ge2 = jnp.zeros((B_pad, D), graph_emb.dtype).at[:B, :].set(graph_emb.reshape(B, D))
    sc2 = jnp.zeros((B_pad, Dc), step_ctx.dtype).at[:B, :].set(step_ctx.reshape(B, Dc))
    # mask: 1.0 == masked.  Pad nodes are masked everywhere; padded batch rows keep
    # their real-node columns unmasked so no softmax row is fully -inf.
    m2 = jnp.ones((B_pad, N_pad), jnp.float32)
    m2 = m2.at[:B, :N].set(mask_f.reshape(B, N).astype(jnp.float32))
    m2 = m2.at[B:, :N].set(0.0)

    # Fuse the three static projections into one (D, 3D) weight (layout plumbing).
    w_kvk = jnp.concatenate([params["k1"], params["v"], params["k2"]], axis=1)

    const2d = lambda shape: pl.BlockSpec(shape, lambda i: (0, 0))

    out = pl.pallas_call(
        decoder_step_kernel,
        out_shape=jax.ShapeDtypeStruct((B_pad, N_pad), jnp.float32),
        grid_spec=pltpu.PrefetchScalarGridSpec(
            num_scalar_prefetch=0,
            grid=(B_pad // TB,),
            in_specs=[
                pl.BlockSpec((TB, N_pad, D), lambda i: (i, 0, 0)),   # node_embeddings
                pl.BlockSpec((TB, D), lambda i: (i, 0)),             # graph_embedding (squeezed)
                pl.BlockSpec((TB, Dc), lambda i: (i, 0)),            # step_context (squeezed)
                pl.BlockSpec((TB, N_pad), lambda i: (i, 0)),         # mask (float)
                const2d((D, 3 * D)),   # [Wk1 | Wv | Wk2]
                const2d((D, D)),       # Wq_fixed
                const2d((D, D)),       # Wout
                const2d((Dc, D)),      # Wq_step
                const2d((D, H)),       # head-selection matrix
                const2d((H, D)),       # head-selection matrix, pre-transposed
            ],
            out_specs=pl.BlockSpec((TB, N_pad), lambda i: (i, 0)),
        ),
        compiler_params=pltpu.CompilerParams(
            dimension_semantics=("parallel",)),
    )(ne, ge2, sc2, m2, w_kvk, params["qf"], params["out"], params["qs"],
      params["sel"], params["selT"])
    return out[:B, :N]   # (B, N) == logits.squeeze(dim=1)


# ---------------- pure-JAX reference (matches the PyTorch semantics) ----------------
def ref_decoder(node_emb, graph_emb, step_ctx, mask_bool, params):
    B, N, D = node_emb.shape
    H, hd = N_HEADS, HEAD_DEPTH
    K1 = node_emb @ params["k1"]
    V = node_emb @ params["v"]
    K2 = node_emb @ params["k2"]
    Qf = graph_emb @ params["qf"]          # (B, 1, D)
    Qs = step_ctx @ params["qs"]           # (B, 1, D)
    Q1 = Qf + Qs

    Qh = Q1.reshape(B, 1, H, hd).transpose(0, 2, 1, 3)   # (B,H,1,hd)
    Kh = K1.reshape(B, N, H, hd).transpose(0, 2, 1, 3)   # (B,H,N,hd)
    Vh = V.reshape(B, N, H, hd).transpose(0, 2, 1, 3)    # (B,H,N,hd)
    s = Qh @ Kh.transpose(0, 1, 3, 2) / MHA_SCALE        # (B,H,1,N)
    s = jnp.where(mask_bool[:, None, None, :], -INF, s)
    p = jax.nn.softmax(s, axis=-1)
    o = (p @ Vh).transpose(0, 2, 1, 3).reshape(B, 1, D)  # combine heads
    Q2 = o @ params["out"]                               # (B,1,D)
    logits = Q2 @ K2.transpose(0, 2, 1) / SHA_SCALE      # (B,1,N)
    logits = CLIP * jnp.tanh(logits)
    logits = jnp.where(mask_bool[:, None, :], -INF, logits)
    return logits[:, 0, :]


def init_params(key):
    D, Dc, H = EMBED_DIM, EMBED_DIM + 2, N_HEADS
    ks = jax.random.split(key, 6)

    def lin(k, fan_in, fan_out):
        bound = 1.0 / np.sqrt(fan_in)
        return jax.random.uniform(k, (fan_in, fan_out), jnp.float32, -bound, bound)

    sel = (np.arange(D)[:, None] // HEAD_DEPTH == np.arange(H)[None, :]).astype(np.float32)
    return {
        "k1": lin(ks[0], D, D),
        "v": lin(ks[1], D, D),
        "k2": lin(ks[2], D, D),
        "qf": lin(ks[3], D, D),
        "out": lin(ks[4], D, D),
        "qs": lin(ks[5], Dc, D),
        "sel": jnp.asarray(sel),            # (D, H)
        "selT": jnp.asarray(sel.T.copy()),  # (H, D)  pre-transposed in the wrapper, not in-kernel
    }


if __name__ == "__main__":
    B, N, D = 2, 16, EMBED_DIM
    Dc = D + 2

    key = jax.random.PRNGKey(0)
    k_ne, k_sc, k_p = jax.random.split(key, 3)

    node_emb = jax.random.normal(k_ne, (B, N, D), jnp.float32)
    graph_emb = jnp.mean(node_emb, axis=1, keepdims=True)          # (B, 1, D)
    step_ctx = jax.random.normal(k_sc, (B, 1, Dc), jnp.float32)

    mask_bool = np.zeros((B, N), dtype=bool)
    mask_bool[:, 1] = True          # a couple of "visited" nodes
    mask_bool[:, 3] = True
    mask_bool = jnp.asarray(mask_bool)
    mask_f = mask_bool.astype(jnp.float32)[:, None, :]             # (B, 1, N)

    params = init_params(k_p)

    logits = decoder_step(node_emb, graph_emb, step_ctx, mask_f, params)
    logits = jax.block_until_ready(logits)

    logits_ref = ref_decoder(node_emb, graph_emb, step_ctx, mask_bool, params)
    np.testing.assert_allclose(np.asarray(logits), np.asarray(logits_ref),
                               rtol=2e-3, atol=2e-3)

    print("KERNEL_OK")
</pallas_src>

<mosaic_0001>
module attributes {stable_mosaic.version = 11 : i64} {
  func.func @decoder_step_kernel(%arg0: i32, %arg1: memref<8x16x128xf32, #tpu.memory_space<vmem>>, %arg2: memref<8x128xf32, #tpu.memory_space<vmem>>, %arg3: memref<8x130xf32, #tpu.memory_space<vmem>>, %arg4: memref<8x16xf32, #tpu.memory_space<vmem>>, %arg5: memref<128x384xf32, #tpu.memory_space<vmem>>, %arg6: memref<128x128xf32, #tpu.memory_space<vmem>>, %arg7: memref<128x128xf32, #tpu.memory_space<vmem>>, %arg8: memref<130x128xf32, #tpu.memory_space<vmem>>, %arg9: memref<128x8xf32, #tpu.memory_space<vmem>>, %arg10: memref<8x128xf32, #tpu.memory_space<vmem>>, %arg11: memref<8x16xf32, #tpu.memory_space<vmem>>) attributes {dimension_semantics = [#tpu.dimension_semantics<parallel>], iteration_bounds = array<i64: 1>, scalar_prefetch = 0 : i64, scratch_operands = 0 : i64, tpu.core_type = #tpu.core_type<tc>, window_params = [{transform_indices = @transform_0, window_bounds = array<i64: 8, 16, 128>}, {transform_indices = @transform_1, window_bounds = array<i64: 8, 128>}, {transform_indices = @transform_2, window_bounds = array<i64: 8, 130>}, {transform_indices = @transform_3, window_bounds = array<i64: 8, 16>}, {pipeline_mode = #tpu.pipeline_mode<synchronous>, transform_indices = @transform_4, window_bounds = array<i64: 128, 384>}, {pipeline_mode = #tpu.pipeline_mode<synchronous>, transform_indices = @transform_5, window_bounds = array<i64: 128, 128>}, {pipeline_mode = #tpu.pipeline_mode<synchronous>, transform_indices = @transform_6, window_bounds = array<i64: 128, 128>}, {pipeline_mode = #tpu.pipeline_mode<synchronous>, transform_indices = @transform_7, window_bounds = array<i64: 130, 128>}, {pipeline_mode = #tpu.pipeline_mode<synchronous>, transform_indices = @transform_8, window_bounds = array<i64: 128, 8>}, {pipeline_mode = #tpu.pipeline_mode<synchronous>, transform_indices = @transform_9, window_bounds = array<i64: 8, 128>}, {transform_indices = @transform_10, window_bounds = array<i64: 8, 16>}]} {
    %c0 = arith.constant 0 : index
    %c0_0 = arith.constant 0 : index
    %c0_1 = arith.constant 0 : index
    %0 = vector.load %arg1[%c0, %c0_0, %c0_1] : memref<8x16x128xf32, #tpu.memory_space<vmem>>, vector<8x16x128xf32>
    %1 = vector.shape_cast %0 : vector<8x16x128xf32> to vector<128x128xf32>
    %c0_2 = arith.constant 0 : index
    %c0_3 = arith.constant 0 : index
    %2 = vector.load %arg2[%c0_2, %c0_3] : memref<8x128xf32, #tpu.memory_space<vmem>>, vector<8x128xf32>
    %c0_4 = arith.constant 0 : index
    %c0_5 = arith.constant 0 : index
    %3 = vector.load %arg3[%c0_4, %c0_5] : memref<8x130xf32, #tpu.memory_space<vmem>>, vector<8x130xf32>
    %c0_6 = arith.constant 0 : index
    %c0_7 = arith.constant 0 : index
    %4 = vector.load %arg4[%c0_6, %c0_7] : memref<8x16xf32, #tpu.memory_space<vmem>>, vector<8x16xf32>
    %c0_8 = arith.constant 0 : index
    %c0_9 = arith.constant 0 : index
    %5 = vector.load %arg5[%c0_8, %c0_9] : memref<128x384xf32, #tpu.memory_space<vmem>>, vector<128x384xf32>
    %cst = arith.constant dense<0.000000e+00> : vector<128x384xf32>
    %6 = tpu.matmul %1, %5, %cst {dimension_numbers = #tpu.dot_dimension_numbers<[1], [0], [0], [1], [0, 0, 1, 1], [], []>} : vector<128x128xf32>, vector<128x384xf32>, vector<128x384xf32> -> vector<128x384xf32>
    %7 = vector.extract_strided_slice %6 {offsets = [0, 0], sizes = [128, 128], strides = [1, 1]} : vector<128x384xf32> to vector<128x128xf32>
    %8 = vector.shape_cast %7 : vector<128x128xf32> to vector<8x16x128xf32>
    %9 = vector.extract_strided_slice %6 {offsets = [0, 128], sizes = [128, 128], strides = [1, 1]} : vector<128x384xf32> to vector<128x128xf32>
    %10 = vector.shape_cast %9 : vector<128x128xf32> to vector<8x16x128xf32>
    %11 = vector.extract_strided_slice %6 {offsets = [0, 256], sizes = [128, 128], strides = [1, 1]} : vector<128x384xf32> to vector<128x128xf32>
    %12 = vector.shape_cast %11 : vector<128x128xf32> to vector<8x16x128xf32>
    %c0_10 = arith.constant 0 : index
    %c0_11 = arith.constant 0 : index
    %13 = vector.load %arg6[%c0_10, %c0_11] : memref<128x128xf32, #tpu.memory_space<vmem>>, vector<128x128xf32>
    %cst_12 = arith.constant dense<0.000000e+00> : vector<8x128xf32>
    %14 = tpu.matmul %2, %13, %cst_12 {dimension_numbers = #tpu.dot_dimension_numbers<[1], [0], [0], [1], [0, 0, 1, 1], [], []>} : vector<8x128xf32>, vector<128x128xf32>, vector<8x128xf32> -> vector<8x128xf32>
    %c0_13 = arith.constant 0 : index
    %c0_14 = arith.constant 0 : index
    %15 = vector.load %arg8[%c0_13, %c0_14] : memref<130x128xf32, #tpu.memory_space<vmem>>, vector<130x128xf32>
    %cst_15 = arith.constant dense<0.000000e+00> : vector<8x128xf32>
    %16 = tpu.matmul %3, %15, %cst_15 {dimension_numbers = #tpu.dot_dimension_numbers<[1], [0], [0], [1], [0, 0, 1, 1], [], []>} : vector<8x130xf32>, vector<130x128xf32>, vector<8x128xf32> -> vector<8x128xf32>
    %17 = arith.addf %14, %16 : vector<8x128xf32>
    %18 = vector.shape_cast %17 : vector<8x128xf32> to vector<8x1x128xf32>
    %19 = vector.broadcast %18 : vector<8x1x128xf32> to vector<8x16x128xf32>
    %20 = arith.mulf %8, %19 : vector<8x16x128xf32>
    %21 = vector.shape_cast %20 : vector<8x16x128xf32> to vector<128x128xf32>
    %c0_16 = arith.constant 0 : index
    %c0_17 = arith.constant 0 : index
    %22 = vector.load %arg9[%c0_16, %c0_17] : memref<128x8xf32, #tpu.memory_space<vmem>>, vector<128x8xf32>
    %cst_18 = arith.constant dense<0.000000e+00> : vector<128x8xf32>
    %23 = tpu.matmul %21, %22, %cst_18 {dimension_numbers = #tpu.dot_dimension_numbers<[1], [0], [0], [1], [0, 0, 1, 1], [], []>} : vector<128x128xf32>, vector<128x8xf32>, vector<128x8xf32> -> vector<128x8xf32>
    %24 = vector.shape_cast %23 : vector<128x8xf32> to vector<8x16x8xf32>
    %cst_19 = arith.constant 2.500000e-01 : f32
    %25 = vector.broadcast %cst_19 : f32 to vector<8x16x8xf32>
    %26 = arith.mulf %24, %25 : vector<8x16x8xf32>
    %27 = vector.shape_cast %4 : vector<8x16xf32> to vector<8x16x1xf32>
    %cst_20 = arith.constant 0.000000e+00 : f32
    %28 = vector.broadcast %cst_20 : f32 to vector<8x16x1xf32>
    %29 = arith.cmpf ogt, %27, %28 : vector<8x16x1xf32>
    %cst_21 = arith.constant -1.000000e+10 : f32
    %30 = vector.shape_cast %29 : vector<8x16x1xi1> to vector<8x16x1xi1>
    %31 = vector.broadcast %30 : vector<8x16x1xi1> to vector<8x16x8xi1>
    %32 = vector.broadcast %cst_21 : f32 to vector<8x16x8xf32>
    %33 = arith.select %31, %32, %26 : vector<8x16x8xi1>, vector<8x16x8xf32>
    %cst_22 = arith.constant dense<0xFF800000> : vector<8x8xf32>
    %34 = vector.multi_reduction <maximumf>, %33, %cst_22 [1] : vector<8x16x8xf32> to vector<8x8xf32>
    %35 = vector.shape_cast %34 : vector<8x8xf32> to vector<8x1x8xf32>
    %36 = vector.broadcast %35 : vector<8x1x8xf32> to vector<8x16x8xf32>
    %37 = arith.subf %33, %36 : vector<8x16x8xf32>
    %38 = math.exp %37 : vector<8x16x8xf32>
    %cst_23 = arith.constant dense<0.000000e+00> : vector<8x8xf32>
    %39 = vector.multi_reduction <add>, %38, %cst_23 [1] : vector<8x16x8xf32> to vector<8x8xf32>
    %40 = vector.shape_cast %39 : vector<8x8xf32> to vector<8x1x8xf32>
    %41 = tpu.reciprocal %40 {approx = true} : vector<8x1x8xf32> -> vector<8x1x8xf32>
    %42 = vector.broadcast %41 : vector<8x1x8xf32> to vector<8x16x8xf32>
    %43 = arith.mulf %38, %42 : vector<8x16x8xf32>
    %44 = vector.shape_cast %43 : vector<8x16x8xf32> to vector<128x8xf32>
    %c0_24 = arith.constant 0 : index
    %c0_25 = arith.constant 0 : index
    %45 = vector.load %arg10[%c0_24, %c0_25] : memref<8x128xf32, #tpu.memory_space<vmem>>, vector<8x128xf32>
    %cst_26 = arith.constant dense<0.000000e+00> : vector<128x128xf32>
    %46 = tpu.matmul %44, %45, %cst_26 {dimension_numbers = #tpu.dot_dimension_numbers<[1], [0], [0], [1], [0, 0, 1, 1], [], []>} : vector<128x8xf32>, vector<8x128xf32>, vector<128x128xf32> -> vector<128x128xf32>
    %47 = vector.shape_cast %46 : vector<128x128xf32> to vector<8x16x128xf32>
    %48 = arith.mulf %47, %10 : vector<8x16x128xf32>
    %cst_27 = arith.constant dense<0.000000e+00> : vector<8x128xf32>
    %49 = vector.multi_reduction <add>, %48, %cst_27 [1] : vector<8x16x128xf32> to vector<8x128xf32>
    %c0_28 = arith.constant 0 : index
    %c0_29 = arith.constant 0 : index
    %50 = vector.load %arg7[%c0_28, %c0_29] : memref<128x128xf32, #tpu.memory_space<vmem>>, vector<128x128xf32>
    %cst_30 = arith.constant dense<0.000000e+00> : vector<8x128xf32>
    %51 = tpu.matmul %49, %50, %cst_30 {dimension_numbers = #tpu.dot_dimension_numbers<[1], [0], [0], [1], [0, 0, 1, 1], [], []>} : vector<8x128xf32>, vector<128x128xf32>, vector<8x128xf32> -> vector<8x128xf32>
    %52 = vector.shape_cast %51 : vector<8x128xf32> to vector<8x1x128xf32>
    %53 = vector.broadcast %52 : vector<8x1x128xf32> to vector<8x16x128xf32>
    %54 = arith.mulf %12, %53 : vector<8x16x128xf32>
    %cst_31 = arith.constant dense<0.000000e+00> : vector<8x16xf32>
    %55 = vector.multi_reduction <add>, %54, %cst_31 [2] : vector<8x16x128xf32> to vector<8x16xf32>
    %cst_32 = arith.constant 0.0883883461 : f32
    %56 = vector.broadcast %cst_32 : f32 to vector<8x16xf32>
    %57 = arith.mulf %55, %56 : vector<8x16xf32>
    %58 = math.tanh %57 : vector<8x16xf32>
    %cst_33 = arith.constant 1.000000e+01 : f32
    %59 = vector.broadcast %cst_33 : f32 to vector<8x16xf32>
    %60 = arith.mulf %59, %58 : vector<8x16xf32>
    %cst_34 = arith.constant 0.000000e+00 : f32
    %61 = vector.broadcast %cst_34 : f32 to vector<8x16xf32>
    %62 = arith.cmpf ogt, %4, %61 : vector<8x16xf32>
    %cst_35 = arith.constant -1.000000e+10 : f32
    %63 = vector.broadcast %cst_35 : f32 to vector<8x16xf32>
    %64 = arith.select %62, %63, %60 : vector<8x16xi1>, vector<8x16xf32>
    %c0_36 = arith.constant 0 : index
    %c0_37 = arith.constant 0 : index
    %65 = vector.load %arg11[%c0_36, %c0_37] : memref<8x16xf32, #tpu.memory_space<vmem>>, vector<8x16xf32>
    tpu.vector_store %arg11[%c0_36, %c0_37], %64 {strides = array<i32>} : memref<8x16xf32, #tpu.memory_space<vmem>>, vector<8x16xf32>,
    return
  }
  func.func @transform_0(%arg0: i32) -> (i32, i32, i32) {
    %c0_i32 = arith.constant 0 : i32
    %c0_i32_0 = arith.constant 0 : i32
    %c0_i32_1 = arith.constant 0 : i32
    return %arg0, %c0_i32, %c0_i32_0 : i32, i32, i32
  }
  func.func @transform_1(%arg0: i32) -> (i32, i32) {
    %c0_i32 = arith.constant 0 : i32
    %c0_i32_0 = arith.constant 0 : i32
    return %arg0, %c0_i32 : i32, i32
  }
  func.func @transform_2(%arg0: i32) -> (i32, i32) {
    %c0_i32 = arith.constant 0 : i32
    %c0_i32_0 = arith.constant 0 : i32
    return %arg0, %c0_i32 : i32, i32
  }
  func.func @transform_3(%arg0: i32) -> (i32, i32) {
    %c0_i32 = arith.constant 0 : i32
    %c0_i32_0 = arith.constant 0 : i32
    return %arg0, %c0_i32 : i32, i32
  }
  func.func @transform_4(%arg0: i32) -> (i32, i32) {
    %c0_i32 = arith.constant 0 : i32
    %c0_i32_0 = arith.constant 0 : i32
    %c0_i32_1 = arith.constant 0 : i32
    return %c0_i32, %c0_i32_0 : i32, i32
  }
  func.func @transform_5(%arg0: i32) -> (i32, i32) {
    %c0_i32 = arith.constant 0 : i32
    %c0_i32_0 = arith.constant 0 : i32
    %c0_i32_1 = arith.constant 0 : i32
    return %c0_i32, %c0_i32_0 : i32, i32
  }
  func.func @transform_6(%arg0: i32) -> (i32, i32) {
    %c0_i32 = arith.constant 0 : i32
    %c0_i32_0 = arith.constant 0 : i32
    %c0_i32_1 = arith.constant 0 : i32
    return %c0_i32, %c0_i32_0 : i32, i32
  }
  func.func @transform_7(%arg0: i32) -> (i32, i32) {
    %c0_i32 = arith.constant 0 : i32
    %c0_i32_0 = arith.constant 0 : i32
    %c0_i32_1 = arith.constant 0 : i32
    return %c0_i32, %c0_i32_0 : i32, i32
  }
  func.func @transform_8(%arg0: i32) -> (i32, i32) {
    %c0_i32 = arith.constant 0 : i32
    %c0_i32_0 = arith.constant 0 : i32
    %c0_i32_1 = arith.constant 0 : i32
    return %c0_i32, %c0_i32_0 : i32, i32
  }
  func.func @transform_9(%arg0: i32) -> (i32, i32) {
    %c0_i32 = arith.constant 0 : i32
    %c0_i32_0 = arith.constant 0 : i32
    %c0_i32_1 = arith.constant 0 : i32
    return %c0_i32, %c0_i32_0 : i32, i32
  }
  func.func @transform_10(%arg0: i32) -> (i32, i32) {
    %c0_i32 = arith.constant 0 : i32
    %c0_i32_0 = arith.constant 0 : i32
    return %arg0, %c0_i32 : i32, i32
  }
}

</mosaic_0001>

<llo_original>
// kernel: decoder_step.1
$region0: #{decoder_step.1}
  #allocation0 [shape = 'u32[]', space=smem, size = 0x4, offset = 0x4, fixed_abs, tag = 'smem constant byte address 0x4 - core index']
  #allocation1 [shape = 'u32[144,128]{1,0:T(1,128)}', space=vmem, size = 0x12000, scoped, tag = 'internal scratch']
  %s0 = inlined_call_operand.vmem [shape: f32[8,16,128], index: 0, kind: input, shape index: {}]
  %s1 = inlined_call_operand.vmem [shape: f32[8,128], index: 1, kind: input, shape index: {}]
  %s2 = inlined_call_operand.vmem [shape: f32[8,130], index: 2, kind: input, shape index: {}]
  %s3 = inlined_call_operand.vmem [shape: f32[8,16], index: 3, kind: input, shape index: {}]
  %s4 = inlined_call_operand.vmem [shape: f32[128,384], index: 4, kind: input, shape index: {}]
  %s5 = inlined_call_operand.vmem [shape: f32[128,128], index: 5, kind: input, shape index: {}]
  %s6 = inlined_call_operand.vmem [shape: f32[128,128], index: 6, kind: input, shape index: {}]
  %s7 = inlined_call_operand.vmem [shape: f32[130,128], index: 7, kind: input, shape index: {}]
  %s8 = inlined_call_operand.vmem [shape: f32[128,8], index: 8, kind: input, shape index: {}]
  %s9 = inlined_call_operand.vmem [shape: f32[8,128], index: 9, kind: input, shape index: {}]
  %s10 = inlined_call_operand.vmem [shape: f32[8,16], index: 10, kind: output, shape index: {}]
  %s11 = sld [smem:[#allocation0]]
  $region50: #{decoder_step.1} parent=0
    _
  %s13 = ssub.s32 1, %s11
  %s14 = scalar_select 0, %s13, %s11
  // Predicated region
  $region2: #{decoder_step.1} parent=0 // pred_check
    _
  $region3: #{decoder_step.1} parent=0 // pred_check_branch
    %16 = sbr.rel (0) target = $region5
  $region4: #{decoder_step.1} parent=0 // pred_region
    _
  $region5: #{decoder_step.1} parent=0 // pred_fallthru
    _
  // Predicated region
  $region6: #{decoder_step.1} parent=0 // pred_check
    _
  $region7: #{decoder_step.1} parent=0 // pred_check_branch
    %18 = sbr.rel (0) target = $region9
  $region8: #{decoder_step.1} parent=0 // pred_region
    _
  $region9: #{decoder_step.1} parent=0 // pred_fallthru
    _
  // Predicated region
  $region10: #{decoder_step.1} parent=0 // pred_check
    _
  $region11: #{decoder_step.1} parent=0 // pred_check_branch
    %20 = sbr.rel (0) target = $region13
  $region12: #{decoder_step.1} parent=0 // pred_region
    _
  $region13: #{decoder_step.1} parent=0 // pred_fallthru
    _
  // Predicated region
  $region14: #{decoder_step.1} parent=0 // pred_check
    _
  $region15: #{decoder_step.1} parent=0 // pred_check_branch
    %22 = sbr.rel (0) target = $region17
  $region16: #{decoder_step.1} parent=0 // pred_region
    _
  $region17: #{decoder_step.1} parent=0 // pred_fallthru
    _
  // Predicated region
  $region18: #{decoder_step.1} parent=0 // pred_check
    _
  $region19: #{decoder_step.1} parent=0 // pred_check_branch
    %24 = sbr.rel (0) target = $region21
  $region20: #{decoder_step.1} parent=0 // pred_region
    _
  $region21: #{decoder_step.1} parent=0 // pred_fallthru
    _
  // Predicated region
  $region22: #{decoder_step.1} parent=0 // pred_check
    _
  $region23: #{decoder_step.1} parent=0 // pred_check_branch
    %26 = sbr.rel (0) target = $region25
  $region24: #{decoder_step.1} parent=0 // pred_region
    _
  $region25: #{decoder_step.1} parent=0 // pred_fallthru
    _
  // Predicated region
  $region26: #{decoder_step.1} parent=0 // pred_check
    _
  $region27: #{decoder_step.1} parent=0 // pred_check_branch
    %28 = sbr.rel (0) target = $region29
  $region28: #{decoder_step.1} parent=0 // pred_region
    _
  $region29: #{decoder_step.1} parent=0 // pred_fallthru
    _
  // Predicated region
  $region30: #{decoder_step.1} parent=0 // pred_check
    _
  $region31: #{decoder_step.1} parent=0 // pred_check_branch
    %30 = sbr.rel (0) target = $region33
  $region32: #{decoder_step.1} parent=0 // pred_region
    _
  $region33: #{decoder_step.1} parent=0 // pred_fallthru
    _
  // Predicated region
  $region34: #{decoder_step.1} parent=0 // pred_check
    _
  $region35: #{decoder_step.1} parent=0 // pred_check_branch
    %32 = sbr.rel (0) target = $region37
  $region36: #{decoder_step.1} parent=0 // pred_region
    _
  $region37: #{decoder_step.1} parent=0 // pred_fallthru
    _
  // Predicated region
  $region38: #{decoder_step.1} parent=0 // pred_check
    _
  $region39: #{decoder_step.1} parent=0 // pred_check_branch
    %34 = sbr.rel (0) target = $region41
  $region40: #{decoder_step.1} parent=0 // pred_region
    _
  $region41: #{decoder_step.1} parent=0 // pred_fallthru
    _
  %v35 = vld [vmem:[%s0] sm:$0xff]
  %v36 = vld [vmem:[%s0 + $0x8] sm:$0xff]
  %v37 = vld [vmem:[%s0 + $0x10] sm:$0xff]
  %v38 = vld [vmem:[%s0 + $0x18] sm:$0xff]
  %v39 = vld [vmem:[%s0 + $0x20] sm:$0xff]
  %v40 = vld [vmem:[%s0 + $0x28] sm:$0xff]
  %v41 = vld [vmem:[%s0 + $0x30] sm:$0xff]
  %v42 = vld [vmem:[%s0 + $0x38] sm:$0xff]
  %v43 = vld [vmem:[%s0 + $0x40] sm:$0xff]
  %v44 = vld [vmem:[%s0 + $0x48] sm:$0xff]
  %v45 = vld [vmem:[%s0 + $0x50] sm:$0xff]
  %v46 = vld [vmem:[%s0 + $0x58] sm:$0xff]
  %v47 = vld [vmem:[%s0 + $0x60] sm:$0xff]
  %v48 = vld [vmem:[%s0 + $0x68] sm:$0xff]
  %v49 = vld [vmem:[%s0 + $0x70] sm:$0xff]
  %v50 = vld [vmem:[%s0 + $0x78] sm:$0xff]
  %v51 = vld [vmem:[%s1] sm:$0xff]
  %v52 = vld [vmem:[%s2] sm:$0xff]
  %v53 = vld [vmem:[%s2 + $0x8] sm:$0xff]
  %v54 = vld [vmem:[%s3] sm:$0xff]
  %v55 = vld [vmem:[%s4] sm:$0xff]
  %v56 = vld [vmem:[%s4 + $0x8] sm:$0xff]
  %v57 = vld [vmem:[%s4 + $0x10] sm:$0xff]
  %v58 = vld [vmem:[%s4 + $0x18] sm:$0xff]
  %v59 = vld [vmem:[%s4 + $0x20] sm:$0xff]
  %v60 = vld [vmem:[%s4 + $0x28] sm:$0xff]
  %v61 = vld [vmem:[%s4 + $0x30] sm:$0xff]
  %v62 = vld [vmem:[%s4 + $0x38] sm:$0xff]
  %v63 = vld [vmem:[%s4 + $0x40] sm:$0xff]
  %v64 = vld [vmem:[%s4 + $0x48] sm:$0xff]
  %v65 = vld [vmem:[%s4 + $0x50] sm:$0xff]
  %v66 = vld [vmem:[%s4 + $0x58] sm:$0xff]
  %v67 = vld [vmem:[%s4 + $0x60] sm:$0xff]
  %v68 = vld [vmem:[%s4 + $0x68] sm:$0xff]
  %v69 = vld [vmem:[%s4 + $0x70] sm:$0xff]
  %v70 = vld [vmem:[%s4 + $0x78] sm:$0xff]
  %v71 = vld [vmem:[%s4 + $0x80] sm:$0xff]
  %v72 = vld [vmem:[%s4 + $0x88] sm:$0xff]
  %v73 = vld [vmem:[%s4 + $0x90] sm:$0xff]
  %v74 = vld [vmem:[%s4 + $0x98] sm:$0xff]
  %v75 = vld [vmem:[%s4 + $0xa0] sm:$0xff]
  %v76 = vld [vmem:[%s4 + $0xa8] sm:$0xff]
  %v77 = vld [vmem:[%s4 + $0xb0] sm:$0xff]
  %v78 = vld [vmem:[%s4 + $0xb8] sm:$0xff]
  %v79 = vld [vmem:[%s4 + $0xc0] sm:$0xff]
  %v80 = vld [vmem:[%s4 + $0xc8] sm:$0xff]
  %v81 = vld [vmem:[%s4 + $0xd0] sm:$0xff]
  %v82 = vld [vmem:[%s4 + $0xd8] sm:$0xff]
  %v83 = vld [vmem:[%s4 + $0xe0] sm:$0xff]
  %v84 = vld [vmem:[%s4 + $0xe8] sm:$0xff]
  %v85 = vld [vmem:[%s4 + $0xf0] sm:$0xff]
  %v86 = vld [vmem:[%s4 + $0xf8] sm:$0xff]
  %v87 = vld [vmem:[%s4 + $0x100] sm:$0xff]
  %v88 = vld [vmem:[%s4 + $0x108] sm:$0xff]
  %v89 = vld [vmem:[%s4 + $0x110] sm:$0xff]
  %v90 = vld [vmem:[%s4 + $0x118] sm:$0xff]
  %v91 = vld [vmem:[%s4 + $0x120] sm:$0xff]
  %v92 = vld [vmem:[%s4 + $0x128] sm:$0xff]
  %v93 = vld [vmem:[%s4 + $0x130] sm:$0xff]
  %v94 = vld [vmem:[%s4 + $0x138] sm:$0xff]
  %v95 = vld [vmem:[%s4 + $0x140] sm:$0xff]
  %v96 = vld [vmem:[%s4 + $0x148] sm:$0xff]
  %v97 = vld [vmem:[%s4 + $0x150] sm:$0xff]
  %v98 = vld [vmem:[%s4 + $0x158] sm:$0xff]
  %v99 = vld [vmem:[%s4 + $0x160] sm:$0xff]
  %v100 = vld [vmem:[%s4 + $0x168] sm:$0xff]
  %v101 = vld [vmem:[%s4 + $0x170] sm:$0xff]
  %v102 = vld [vmem:[%s4 + $0x178] sm:$0xff]
  %103 = vmatprep.subr.mxu0 %v56
  %104 = vmatpush1.msra.mxu0 %v55
  %105 = vmatprep.subr.mxu0 %v59
  %106 = vmatpush1.msra.mxu0 %v58
  %107 = vmatprep.subr.mxu0 %v62
  %108 = vmatpush1.msra.mxu0 %v61
  %109 = vmatprep.subr.mxu0 %v65
  %110 = vmatpush1.msra.mxu0 %v64
  %111 = vmatprep.subr.mxu0 %v68
  %112 = vmatpush1.msra.mxu0 %v67
  %113 = vmatprep.subr.mxu0 %v71
  %114 = vmatpush1.msra.mxu0 %v70
  %115 = vmatprep.subr.mxu0 %v74
  %116 = vmatpush1.msra.mxu0 %v73
  %117 = vmatprep.subr.mxu0 %v77
  %118 = vmatpush1.msra.mxu0 %v76
  %119 = vmatprep.subr.mxu0 %v80
  %120 = vmatpush1.msra.mxu0 %v79
  %121 = vmatprep.subr.mxu0 %v83
  %122 = vmatpush1.msra.mxu0 %v82
  %123 = vmatprep.subr.mxu0 %v86
  %124 = vmatpush1.msra.mxu0 %v85
  %125 = vmatprep.subr.mxu0 %v89
  %126 = vmatpush1.msra.mxu0 %v88
  %127 = vmatprep.subr.mxu0 %v92
  %128 = vmatpush1.msra.mxu0 %v91
  %129 = vmatprep.subr.mxu0 %v95
  %130 = vmatpush1.msra.mxu0 %v94
  %131 = vmatprep.subr.mxu0 %v98
  %132 = vmatpush1.msra.mxu0 %v97
  %133 = vmatprep.subr.mxu0 %v101
  %134 = vmatpush1.msra.mxu0 %v100
  %135 = vmatprep.subr.mxu0 0.0
  %136 = vmatpush1.msra.mxu0 0.0
  %137 = vmatprep.subr.mxu0 0.0
  %138 = vmatpush1.msra.mxu0 0.0
  %139 = vmatprep.subr.mxu0 0.0
  %140 = vmatpush1.msra.mxu0 0.0
  %141 = vmatprep.subr.mxu0 0.0
  %142 = vmatpush1.msra.mxu0 0.0
  %143 = vmatprep.subr.mxu0 0.0
  %144 = vmatpush1.msra.mxu0 0.0
  %145 = vmatprep.subr.mxu0 0.0
  %146 = vmatpush1.msra.mxu0 0.0
  %147 = vmatprep.subr.mxu0 0.0
  %148 = vmatpush1.msra.mxu0 0.0
  %149 = vmatprep.subr.mxu0 0.0
  %150 = vmatpush1.msra.mxu0 0.0
  %151 = vmatprep.subr.mxu0 0.0
  %152 = vmatpush1.msra.mxu0 0.0
  %153 = vmatprep.subr.mxu0 0.0
  %154 = vmatpush1.msra.mxu0 0.0
  %155 = vmatprep.subr.mxu0 0.0
  %156 = vmatpush1.msra.mxu0 0.0
  %157 = vmatprep.subr.mxu0 0.0
  %158 = vmatpush1.msra.mxu0 0.0
  %159 = vmatprep.subr.mxu0 0.0
  %160 = vmatpush1.msra.mxu0 0.0
  %161 = vmatprep.subr.mxu0 0.0
  %162 = vmatpush1.msra.mxu0 0.0
  %163 = vmatprep.subr.mxu0 0.0
  %164 = vmatpush1.msra.mxu0 0.0
  %165 = vmatprep.subr.mxu0 0.0
  %166 = vmatpush1.msra.mxu0 0.0
  %167 = vmatprep.mubr.f32.mxu0 0.0
  %168 = vmatmul.mubr.f32.gmra.mrb[0].mxu0 %v35
  %v169 = vpop.f32.mrb[0].mxu0
  %v170 = vadd.f32 0.0, %v169
  %v171 = vpop.f32.mrb[0].mxu0
  %v172 = vadd.f32 0.0, %v171
  %173 = vmatprep.mubr.f32.mxu0 0.0
  %174 = vmatmul.mubr.f32.gmra.mrb[0].mxu0 %v36
  %v175 = vpop.f32.mrb[0].mxu0
  %v176 = vadd.f32 0.0, %v175
  %v177 = vpop.f32.mrb[0].mxu0
  %v178 = vadd.f32 0.0, %v177
  %179 = vmatprep.mubr.f32.mxu0 0.0
  %180 = vmatmul.mubr.f32.gmra.mrb[0].mxu0 %v37
  %v181 = vpop.f32.mrb[0].mxu0
  %v182 = vadd.f32 0.0, %v181
  %v183 = vpop.f32.mrb[0].mxu0
  %v184 = vadd.f32 0.0, %v183
  %185 = vmatprep.mubr.f32.mxu0 0.0
  %186 = vmatmul.mubr.f32.gmra.mrb[0].mxu0 %v38
  %v187 = vpop.f32.mrb[0].mxu0
  %v188 = vadd.f32 0.0, %v187
  %v189 = vpop.f32.mrb[0].mxu0
  %v190 = vadd.f32 0.0, %v189
  %191 = vmatprep.mubr.f32.mxu0 0.0
  %192 = vmatmul.mubr.f32.gmra.mrb[0].mxu0 %v39
  %v193 = vpop.f32.mrb[0].mxu0
  %v194 = vadd.f32 0.0, %v193
  %v195 = vpop.f32.mrb[0].mxu0
  %v196 = vadd.f32 0.0, %v195
  %197 = vmatprep.mubr.f32.mxu0 0.0
  %198 = vmatmul.mubr.f32.gmra.mrb[0].mxu0 %v40
  %v199 = vpop.f32.mrb[0].mxu0
  %v200 = vadd.f32 0.0, %v199
  %v201 = vpop.f32.mrb[0].mxu0
  %v202 = vadd.f32 0.0, %v201
  %203 = vmatprep.mubr.f32.mxu0 0.0
  %204 = vmatmul.mubr.f32.gmra.mrb[0].mxu0 %v41
  %v205 = vpop.f32.mrb[0].mxu0
  %v206 = vadd.f32 0.0, %v205
  %v207 = vpop.f32.mrb[0].mxu0
  %v208 = vadd.f32 0.0, %v207
  %209 = vmatprep.mubr.f32.mxu0 0.0
  %210 = vmatmul.mubr.f32.gmra.mrb[0].mxu0 %v42
  %v211 = vpop.f32.mrb[0].mxu0
  %v212 = vadd.f32 0.0, %v211
  %v213 = vpop.f32.mrb[0].mxu0
  %v214 = vadd.f32 0.0, %v213
  %215 = vmatprep.mubr.f32.mxu0 0.0
  %216 = vmatmul.mubr.f32.gmra.mrb[0].mxu0 %v43
  %v217 = vpop.f32.mrb[0].mxu0
  %v218 = vadd.f32 0.0, %v217
  %v219 = vpop.f32.mrb[0].mxu0
  %v220 = vadd.f32 0.0, %v219
  %221 = vmatprep.mubr.f32.mxu0 0.0
  %222 = vmatmul.mubr.f32.gmra.mrb[0].mxu0 %v44
  %v223 = vpop.f32.mrb[0].mxu0
  %v224 = vadd.f32 0.0, %v223
  %v225 = vpop.f32.mrb[0].mxu0
  %v226 = vadd.f32 0.0, %v225
  %227 = vmatprep.mubr.f32.mxu0 0.0
  %228 = vmatmul.mubr.f32.gmra.mrb[0].mxu0 %v45
  %v229 = vpop.f32.mrb[0].mxu0
  %v230 = vadd.f32 0.0, %v229
  %v231 = vpop.f32.mrb[0].mxu0
  %v232 = vadd.f32 0.0, %v231
  %233 = vmatprep.mubr.f32.mxu0 0.0
  %234 = vmatmul.mubr.f32.gmra.mrb[0].mxu0 %v46
  %v235 = vpop.f32.mrb[0].mxu0
  %v236 = vadd.f32 0.0, %v235
  %v237 = vpop.f32.mrb[0].mxu0
  %v238 = vadd.f32 0.0, %v237
  %239 = vmatprep.mubr.f32.mxu0 0.0
  %240 = vmatmul.mubr.f32.gmra.mrb[0].mxu0 %v47
  %v241 = vpop.f32.mrb[0].mxu0
  %v242 = vadd.f32 0.0, %v241
  %v243 = vpop.f32.mrb[0].mxu0
  %v244 = vadd.f32 0.0, %v243
  %245 = vmatprep.mubr.f32.mxu0 0.0
  %246 = vmatmul.mubr.f32.gmra.mrb[0].mxu0 %v48
  %v247 = vpop.f32.mrb[0].mxu0
  %v248 = vadd.f32 0.0, %v247
  %v249 = vpop.f32.mrb[0].mxu0
  %v250 = vadd.f32 0.0, %v249
  %251 = vmatprep.mubr.f32.mxu0 0.0
  %252 = vmatmul.mubr.f32.gmra.mrb[0].mxu0 %v49
  %v253 = vpop.f32.mrb[0].mxu0
  %v254 = vadd.f32 0.0, %v253
  %v255 = vpop.f32.mrb[0].mxu0
  %v256 = vadd.f32 0.0, %v255
  %257 = vmatprep.mubr.f32.mxu0 0.0
  %258 = vmatmul.mubr.f32.gmra.mrb[0].mxu0 %v50
  %v259 = vpop.f32.mrb[0].mxu0
  %v260 = vadd.f32 0.0, %v259
  %v261 = vpop.f32.mrb[0].mxu0
  %v262 = vadd.f32 0.0, %v261
  %263 = vdwg.mxu0
  %264 = vmatprep.subr.mxu0 0.0
  %265 = vmatpush1.msra.mxu0 %v57
  %266 = vmatprep.subr.mxu0 0.0
  %267 = vmatpush1.msra.mxu0 %v60
  %268 = vmatprep.subr.mxu0 0.0
  %269 = vmatpush1.msra.mxu0 %v63
  %270 = vmatprep.subr.mxu0 0.0
  %271 = vmatpush1.msra.mxu0 %v66
  %272 = vmatprep.subr.mxu0 0.0
  %273 = vmatpush1.msra.mxu0 %v69
  %274 = vmatprep.subr.mxu0 0.0
  %275 = vmatpush1.msra.mxu0 %v72
  %276 = vmatprep.subr.mxu0 0.0
  %277 = vmatpush1.msra.mxu0 %v75
  %278 = vmatprep.subr.mxu0 0.0
  %279 = vmatpush1.msra.mxu0 %v78
  %280 = vmatprep.subr.mxu0 0.0
  %281 = vmatpush1.msra.mxu0 %v81
  %282 = vmatprep.subr.mxu0 0.0
  %283 = vmatpush1.msra.mxu0 %v84
  %284 = vmatprep.subr.mxu0 0.0
  %285 = vmatpush1.msra.mxu0 %v87
  %286 = vmatprep.subr.mxu0 0.0
  %287 = vmatpush1.msra.mxu0 %v90
  %288 = vmatprep.subr.mxu0 0.0
  %289 = vmatpush1.msra.mxu0 %v93
  %290 = vmatprep.subr.mxu0 0.0
  %291 = vmatpush1.msra.mxu0 %v96
  %292 = vmatprep.subr.mxu0 0.0
  %293 = vmatpush1.msra.mxu0 %v99
  %294 = vmatprep.subr.mxu0 0.0
  %295 = vmatpush1.msra.mxu0 %v102
  %296 = vmatprep.subr.mxu0 0.0
  %297 = vmatpush1.msra.mxu0 0.0
  %298 = vmatprep.subr.mxu0 0.0
  %299 = vmatpush1.msra.mxu0 0.0
  %300 = vmatprep.subr.mxu0 0.0
  %301 = vmatpush1.msra.mxu0 0.0
  %302 = vmatprep.subr.mxu0 0.0
  %303 = vmatpush1.msra.mxu0 0.0
  %304 = vmatprep.subr.mxu0 0.0
  %305 = vmatpush1.msra.mxu0 0.0
  %306 = vmatprep.subr.mxu0 0.0
  %307 = vmatpush1.msra.mxu0 0.0
  %308 = vmatprep.subr.mxu0 0.0
  %309 = vmatpush1.msra.mxu0 0.0
  %310 = vmatprep.subr.mxu0 0.0
  %311 = vmatpush1.msra.mxu0 0.0
  %312 = vmatprep.subr.mxu0 0.0
  %313 = vmatpush1.msra.mxu0 0.0
  %314 = vmatprep.subr.mxu0 0.0
  %315 = vmatpush1.msra.mxu0 0.0
  %316 = vmatprep.subr.mxu0 0.0
  %317 = vmatpush1.msra.mxu0 0.0
  %318 = vmatprep.subr.mxu0 0.0
  %319 = vmatpush1.msra.mxu0 0.0
  %320 = vmatprep.subr.mxu0 0.0
  %321 = vmatpush1.msra.mxu0 0.0
  %322 = vmatprep.subr.mxu0 0.0
  %323 = vmatpush1.msra.mxu0 0.0
  %324 = vmatprep.subr.mxu0 0.0
  %325 = vmatpush1.msra.mxu0 0.0
  %326 = vmatprep.subr.mxu0 0.0
  %327 = vmatpush1.msra.mxu0 0.0
  %328 = vmatprep.mubr.f32.mxu0 0.0
  %329 = vmatmul.mubr.f32.gmra.mrb[0].mxu0 %v35
  %v330 = vpop.f32.mrb[0].mxu0
  %v331 = vadd.f32 0.0, %v330
  %v332 = vpop.f32.mrb[0].mxu0
  %333 = vmatprep.mubr.f32.mxu0 0.0
  %334 = vmatmul.mubr.f32.gmra.mrb[0].mxu0 %v36
  %v335 = vpop.f32.mrb[0].mxu0
  %v336 = vadd.f32 0.0, %v335
  %v337 = vpop.f32.mrb[0].mxu0
  %338 = vmatprep.mubr.f32.mxu0 0.0
  %339 = vmatmul.mubr.f32.gmra.mrb[0].mxu0 %v37
  %v340 = vpop.f32.mrb[0].mxu0
  %v341 = vadd.f32 0.0, %v340
  %v342 = vpop.f32.mrb[0].mxu0
  %343 = vmatprep.mubr.f32.mxu0 0.0
  %344 = vmatmul.mubr.f32.gmra.mrb[0].mxu0 %v38
  %v345 = vpop.f32.mrb[0].mxu0
  %v346 = vadd.f32 0.0, %v345
  %v347 = vpop.f32.mrb[0].mxu0
  %348 = vmatprep.mubr.f32.mxu0 0.0
  %349 = vmatmul.mubr.f32.gmra.mrb[0].mxu0 %v39
  %v350 = vpop.f32.mrb[0].mxu0
  %v351 = vadd.f32 0.0, %v350
  %v352 = vpop.f32.mrb[0].mxu0
  %353 = vmatprep.mubr.f32.mxu0 0.0
  %354 = vmatmul.mubr.f32.gmra.mrb[0].mxu0 %v40
  %v355 = vpop.f32.mrb[0].mxu0
  %v356 = vadd.f32 0.0, %v355
  %v357 = vpop.f32.mrb[0].mxu0
  %358 = vmatprep.mubr.f32.mxu0 0.0
  %359 = vmatmul.mubr.f32.gmra.mrb[0].mxu0 %v41
  %v360 = vpop.f32.mrb[0].mxu0
  %v361 = vadd.f32 0.0, %v360
  %v362 = vpop.f32.mrb[0].mxu0
  %363 = vmatprep.mubr.f32.mxu0 0.0
  %364 = vmatmul.mubr.f32.gmra.mrb[0].mxu0 %v42
  %v365 = vpop.f32.mrb[0].mxu0
  %v366 = vadd.f32 0.0, %v365
  %v367 = vpop.f32.mrb[0].mxu0
  %368 = vmatprep.mubr.f32.mxu0 0.0
  %369 = vmatmul.mubr.f32.gmra.mrb[0].mxu0 %v43
  %v370 = vpop.f32.mrb[0].mxu0
  %v371 = vadd.f32 0.0, %v370
  %v372 = vpop.f32.mrb[0].mxu0
  %373 = vmatprep.mubr.f32.mxu0 0.0
  %374 = vmatmul.mubr.f32.gmra.mrb[0].mxu0 %v44
  %v375 = vpop.f32.mrb[0].mxu0
  %v376 = vadd.f32 0.0, %v375
  %v377 = vpop.f32.mrb[0].mxu0
  %378 = vmatprep.mubr.f32.mxu0 0.0
  %379 = vmatmul.mubr.f32.gmra.mrb[0].mxu0 %v45
  %v380 = vpop.f32.mrb[0].mxu0
  %v381 = vadd.f32 0.0, %v380
  %v382 = vpop.f32.mrb[0].mxu0
  %383 = vmatprep.mubr.f32.mxu0 0.0
  %384 = vmatmul.mubr.f32.gmra.mrb[0].mxu0 %v46
  %v385 = vpop.f32.mrb[0].mxu0
  %v386 = vadd.f32 0.0, %v385
  %v387 = vpop.f32.mrb[0].mxu0
  %388 = vmatprep.mubr.f32.mxu0 0.0
  %389 = vmatmul.mubr.f32.gmra.mrb[0].mxu0 %v47
  %v390 = vpop.f32.mrb[0].mxu0
  %v391 = vadd.f32 0.0, %v390
  %v392 = vpop.f32.mrb[0].mxu0
  %393 = vmatprep.mubr.f32.mxu0 0.0
  %394 = vmatmul.mubr.f32.gmra.mrb[0].mxu0 %v48
  %v395 = vpop.f32.mrb[0].mxu0
  %v396 = vadd.f32 0.0, %v395
  %v397 = vpop.f32.mrb[0].mxu0
  %398 = vmatprep.mubr.f32.mxu0 0.0
  %399 = vmatmul.mubr.f32.gmra.mrb[0].mxu0 %v49
  %v400 = vpop.f32.mrb[0].mxu0
  %v401 = vadd.f32 0.0, %v400
  %v402 = vpop.f32.mrb[0].mxu0
  %403 = vmatprep.mubr.f32.mxu0 0.0
  %404 = vmatmul.mubr.f32.gmra.mrb[0].mxu0 %v50
  %v405 = vpop.f32.mrb[0].mxu0
  %v406 = vadd.f32 0.0, %v405
  %v407 = vpop.f32.mrb[0].mxu0
  %408 = vdwg.mxu0
  %v409 = vld [vmem:[%s5] sm:$0xff]
  %v410 = vld [vmem:[%s5 + $0x8] sm:$0xff]
  %v411 = vld [vmem:[%s5 + $0x10] sm:$0xff]
  %v412 = vld [vmem:[%s5 + $0x18] sm:$0xff]
  %v413 = vld [vmem:[%s5 + $0x20] sm:$0xff]
  %v414 = vld [vmem:[%s5 + $0x28] sm:$0xff]
  %v415 = vld [vmem:[%s5 + $0x30] sm:$0xff]
  %v416 = vld [vmem:[%s5 + $0x38] sm:$0xff]
  %v417 = vld [vmem:[%s5 + $0x40] sm:$0xff]
  %v418 = vld [vmem:[%s5 + $0x48] sm:$0xff]
  %v419 = vld [vmem:[%s5 + $0x50] sm:$0xff]
  %v420 = vld [vmem:[%s5 + $0x58] sm:$0xff]
  %v421 = vld [vmem:[%s5 + $0x60] sm:$0xff]
  %v422 = vld [vmem:[%s5 + $0x68] sm:$0xff]
  %v423 = vld [vmem:[%s5 + $0x70] sm:$0xff]
  %v424 = vld [vmem:[%s5 + $0x78] sm:$0xff]
  %v425 = vld [vmem:[%s7] sm:$0xff]
  %v426 = vld [vmem:[%s7 + $0x8] sm:$0xff]
  %v427 = vld [vmem:[%s7 + $0x10] sm:$0xff]
  %v428 = vld [vmem:[%s7 + $0x18] sm:$0xff]
  %v429 = vld [vmem:[%s7 + $0x20] sm:$0xff]
  %v430 = vld [vmem:[%s7 + $0x28] sm:$0xff]
  %v431 = vld [vmem:[%s7 + $0x30] sm:$0xff]
  %v432 = vld [vmem:[%s7 + $0x38] sm:$0xff]
  %v433 = vld [vmem:[%s7 + $0x40] sm:$0xff]
  %v434 = vld [vmem:[%s7 + $0x48] sm:$0xff]
  %v435 = vld [vmem:[%s7 + $0x50] sm:$0xff]
  %v436 = vld [vmem:[%s7 + $0x58] sm:$0xff]
  %v437 = vld [vmem:[%s7 + $0x60] sm:$0xff]
  %v438 = vld [vmem:[%s7 + $0x68] sm:$0xff]
  %v439 = vld [vmem:[%s7 + $0x70] sm:$0xff]
  %v440 = vld [vmem:[%s7 + $0x78] sm:$0xff]
  %v441 = vld [vmem:[%s7 + $0x80] sm:$0x3]
  %vm442 = vcmask 15360
  %v444 = vsel %vm442, %v53, 0
  %vm446 = vcmask 1041408
  %v448 = vsel %vm446, %v441, 0
  %450 = vmatprep.subr.mxu0 0.0
  %451 = vmatpush1.msra.mxu0 %v425
  %452 = vmatprep.subr.mxu0 0.0
  %453 = vmatpush1.msra.mxu0 %v426
  %454 = vmatprep.subr.mxu0 0.0
  %455 = vmatpush1.msra.mxu0 %v427
  %456 = vmatprep.subr.mxu0 0.0
  %457 = vmatpush1.msra.mxu0 %v428
  %458 = vmatprep.subr.mxu0 0.0
  %459 = vmatpush1.msra.mxu0 %v429
  %460 = vmatprep.subr.mxu0 0.0
  %461 = vmatpush1.msra.mxu0 %v430
  %462 = vmatprep.subr.mxu0 0.0
  %463 = vmatpush1.msra.mxu0 %v431
  %464 = vmatprep.subr.mxu0 0.0
  %465 = vmatpush1.msra.mxu0 %v432
  %466 = vmatprep.subr.mxu0 0.0
  %467 = vmatpush1.msra.mxu0 %v433
  %468 = vmatprep.subr.mxu0 0.0
  %469 = vmatpush1.msra.mxu0 %v434
  %470 = vmatprep.subr.mxu0 0.0
  %471 = vmatpush1.msra.mxu0 %v435
  %472 = vmatprep.subr.mxu0 0.0
  %473 = vmatpush1.msra.mxu0 %v436
  %474 = vmatprep.subr.mxu0 0.0
  %475 = vmatpush1.msra.mxu0 %v437
  %476 = vmatprep.subr.mxu0 0.0
  %477 = vmatpush1.msra.mxu0 %v438
  %478 = vmatprep.subr.mxu0 0.0
  %479 = vmatpush1.msra.mxu0 %v439
  %480 = vmatprep.subr.mxu0 0.0
  %481 = vmatpush1.msra.mxu0 %v440
  %482 = vmatprep.subr.mxu0 0.0
  %483 = vmatpush1.msra.mxu0 %v448
  %484 = vmatprep.subr.mxu0 0.0
  %485 = vmatpush1.msra.mxu0 0.0
  %486 = vmatprep.subr.mxu0 0.0
  %487 = vmatpush1.msra.mxu0 0.0
  %488 = vmatprep.subr.mxu0 0.0
  %489 = vmatpush1.msra.mxu0 0.0
  %490 = vmatprep.subr.mxu0 0.0
  %491 = vmatpush1.msra.mxu0 0.0
  %492 = vmatprep.subr.mxu0 0.0
  %493 = vmatpush1.msra.mxu0 0.0
  %494 = vmatprep.subr.mxu0 0.0
  %495 = vmatpush1.msra.mxu0 0.0
  %496 = vmatprep.subr.mxu0 0.0
  %497 = vmatpush1.msra.mxu0 0.0
  %498 = vmatprep.subr.mxu0 0.0
  %499 = vmatpush1.msra.mxu0 0.0
  %500 = vmatprep.subr.mxu0 0.0
  %501 = vmatpush1.msra.mxu0 0.0
  %502 = vmatprep.subr.mxu0 0.0
  %503 = vmatpush1.msra.mxu0 0.0
  %504 = vmatprep.subr.mxu0 0.0
  %505 = vmatpush1.msra.mxu0 0.0
  %506 = vmatprep.subr.mxu0 0.0
  %507 = vmatpush1.msra.mxu0 0.0
  %508 = vmatprep.subr.mxu0 0.0
  %509 = vmatpush1.msra.mxu0 0.0
  %510 = vmatprep.subr.mxu0 0.0
  %511 = vmatpush1.msra.mxu0 0.0
  %512 = vmatprep.subr.mxu0 0.0
  %513 = vmatpush1.msra.mxu0 0.0
  %514 = vmatprep.mubr.f32.mxu0 %v444
  %515 = vmatmul.mubr.f32.gmra.mrb[0].mxu0 %v52
  %v516 = vpop.f32.mrb[0].mxu0
  %v517 = vadd.f32 0.0, %v516
  %v518 = vpop.f32.mrb[0].mxu0
  %519 = vdwg.mxu0
  %520 = vmatprep.subr.mxu0 0.0
  %521 = vmatpush1.msra.mxu0 %v409
  %522 = vmatprep.subr.mxu0 0.0
  %523 = vmatpush1.msra.mxu0 %v410
  %524 = vmatprep.subr.mxu0 0.0
  %525 = vmatpush1.msra.mxu0 %v411
  %526 = vmatprep.subr.mxu0 0.0
  %527 = vmatpush1.msra.mxu0 %v412
  %528 = vmatprep.subr.mxu0 0.0
  %529 = vmatpush1.msra.mxu0 %v413
  %530 = vmatprep.subr.mxu0 0.0
  %531 = vmatpush1.msra.mxu0 %v414
  %532 = vmatprep.subr.mxu0 0.0
  %533 = vmatpush1.msra.mxu0 %v415
  %534 = vmatprep.subr.mxu0 0.0
  %535 = vmatpush1.msra.mxu0 %v416
  %536 = vmatprep.subr.mxu0 0.0
  %537 = vmatpush1.msra.mxu0 %v417
  %538 = vmatprep.subr.mxu0 0.0
  %539 = vmatpush1.msra.mxu0 %v418
  %540 = vmatprep.subr.mxu0 0.0
  %541 = vmatpush1.msra.mxu0 %v419
  %542 = vmatprep.subr.mxu0 0.0
  %543 = vmatpush1.msra.mxu0 %v420
  %544 = vmatprep.subr.mxu0 0.0
  %545 = vmatpush1.msra.mxu0 %v421
  %546 = vmatprep.subr.mxu0 0.0
  %547 = vmatpush1.msra.mxu0 %v422
  %548 = vmatprep.subr.mxu0 0.0
  %549 = vmatpush1.msra.mxu0 %v423
  %550 = vmatprep.subr.mxu0 0.0
  %551 = vmatpush1.msra.mxu0 %v424
  %552 = vmatprep.subr.mxu0 0.0
  %553 = vmatpush1.msra.mxu0 0.0
  %554 = vmatprep.subr.mxu0 0.0
  %555 = vmatpush1.msra.mxu0 0.0
  %556 = vmatprep.subr.mxu0 0.0
  %557 = vmatpush1.msra.mxu0 0.0
  %558 = vmatprep.subr.mxu0 0.0
  %559 = vmatpush1.msra.mxu0 0.0
  %560 = vmatprep.subr.mxu0 0.0
  %561 = vmatpush1.msra.mxu0 0.0
  %562 = vmatprep.subr.mxu0 0.0
  %563 = vmatpush1.msra.mxu0 0.0
  %564 = vmatprep.subr.mxu0 0.0
  %565 = vmatpush1.msra.mxu0 0.0
  %566 = vmatprep.subr.mxu0 0.0
  %567 = vmatpush1.msra.mxu0 0.0
  %568 = vmatprep.subr.mxu0 0.0
  %569 = vmatpush1.msra.mxu0 0.0
  %570 = vmatprep.subr.mxu0 0.0
  %571 = vmatpush1.msra.mxu0 0.0
  %572 = vmatprep.subr.mxu0 0.0
  %573 = vmatpush1.msra.mxu0 0.0
  %574 = vmatprep.subr.mxu0 0.0
  %575 = vmatpush1.msra.mxu0 0.0
  %576 = vmatprep.subr.mxu0 0.0
  %577 = vmatpush1.msra.mxu0 0.0
  %578 = vmatprep.subr.mxu0 0.0
  %579 = vmatpush1.msra.mxu0 0.0
  %580 = vmatprep.subr.mxu0 0.0
  %581 = vmatpush1.msra.mxu0 0.0
  %582 = vmatprep.subr.mxu0 0.0
  %583 = vmatpush1.msra.mxu0 0.0
  %584 = vmatprep.mubr.f32.mxu0 0.0
  %585 = vmatmul.mubr.f32.gmra.mrb[0].mxu0 %v51
  %v586 = vpop.f32.mrb[0].mxu0
  %v587 = vadd.f32 %v517, %v586
  %v588 = vpop.f32.mrb[0].mxu0
  %589 = vdwg.mxu0
  %v591 = vcombine.high %v587, %v587
  %v593 = vunpack.c.l.s4 1966171168
  %v594 = vunpack.c.0.s8 %v593
  %v595 = vlaneseq
  %v596 = vshrl.u32 %v595, 7
  %v597 = vsub.s32 %v594, %v596
  %v598 = vrot.slane %v587, %v597
  %v600 = vunpack.c.l.s4 1966171168
  %v601 = vunpack.c.0.s8 %v600
  %v602 = vlaneseq
  %v603 = vshrl.u32 %v602, 7
  %v604 = vsub.s32 %v601, %v603
  %v605 = vrot.slane %v591, %v604
  %v606 = vcombine.high %v598, %v598
  %v607 = vcombine.high %v605, %v605
  %v609 = vunpack.c.l.s4 1966171168
  %v610 = vunpack.c.0.s8 %v609
  %v611 = vlaneseq
  %v612 = vshrl.u32 %v611, 7
  %v613 = vsub.s32 %v610, %v612
  %v614 = vrot.slane %v598, %v613
  %v616 = vunpack.c.l.s4 1966171168
  %v617 = vunpack.c.0.s8 %v616
  %v618 = vlaneseq
  %v619 = vshrl.u32 %v618, 7
  %v620 = vsub.s32 %v617, %v619
  %v621 = vrot.slane %v605, %v620
  %v623 = vunpack.c.l.s4 1966171168
  %v624 = vunpack.c.0.s8 %v623
  %v625 = vlaneseq
  %v626 = vshrl.u32 %v625, 7
  %v627 = vsub.s32 %v624, %v626
  %v628 = vrot.slane %v606, %v627
  %v630 = vunpack.c.l.s4 1966171168
  %v631 = vunpack.c.0.s8 %v630
  %v632 = vlaneseq
  %v633 = vshrl.u32 %v632, 7
  %v634 = vsub.s32 %v631, %v633
  %v635 = vrot.slane %v607, %v634
  %v636 = vcombine.high %v614, %v614
  %v637 = vcombine.high %v621, %v621
  %v638 = vcombine.high %v628, %v628
  %v639 = vcombine.high %v635, %v635
  %v640 = vlaneseq
  %v641 = vshrl.u32 %v640, 7
  %v642 = vsub.s32 0, %v641
  %v643 = vrot.slane %v614, %v642
  %v644 = vlaneseq
  %v645 = vshrl.u32 %v644, 7
  %v646 = vsub.s32 0, %v645
  %v647 = vrot.slane %v628, %v646
  %v648 = vlaneseq
  %v649 = vshrl.u32 %v648, 7
  %v650 = vsub.s32 0, %v649
  %v651 = vrot.slane %v636, %v650
  %v652 = vlaneseq
  %v653 = vshrl.u32 %v652, 7
  %v654 = vsub.s32 0, %v653
  %v655 = vrot.slane %v638, %v654
  %v656 = vlaneseq
  %v657 = vshrl.u32 %v656, 7
  %v658 = vsub.s32 0, %v657
  %v659 = vrot.slane %v621, %v658
  %v660 = vlaneseq
  %v661 = vshrl.u32 %v660, 7
  %v662 = vsub.s32 0, %v661
  %v663 = vrot.slane %v635, %v662
  %v664 = vlaneseq
  %v665 = vshrl.u32 %v664, 7
  %v666 = vsub.s32 0, %v665
  %v667 = vrot.slane %v637, %v666
  %v668 = vlaneseq
  %v669 = vshrl.u32 %v668, 7
  %v670 = vsub.s32 0, %v669
  %v671 = vrot.slane %v639, %v670
  %v680 = vmul.f32 %v170, %v643
  %v681 = vmul.f32 %v176, %v643
  %v682 = vmul.f32 %v182, %v647
  %v683 = vmul.f32 %v188, %v647
  %v684 = vmul.f32 %v194, %v651
  %v685 = vmul.f32 %v200, %v651
  %v686 = vmul.f32 %v206, %v655
  %v687 = vmul.f32 %v212, %v655
  %v688 = vmul.f32 %v218, %v659
  %v689 = vmul.f32 %v224, %v659
  %v690 = vmul.f32 %v230, %v663
  %v691 = vmul.f32 %v236, %v663
  %v692 = vmul.f32 %v242, %v667
  %v693 = vmul.f32 %v248, %v667
  %v694 = vmul.f32 %v254, %v671
  %v695 = vmul.f32 %v260, %v671
  %v696 = vld [vmem:[%s8] sm:$0xff]
  %v697 = vld [vmem:[%s8 + $0x8] sm:$0xff]
  %v698 = vld [vmem:[%s8 + $0x10] sm:$0xff]
  %v699 = vld [vmem:[%s8 + $0x18] sm:$0xff]
  %v700 = vld [vmem:[%s8 + $0x20] sm:$0xff]
  %v701 = vld [vmem:[%s8 + $0x28] sm:$0xff]
  %v702 = vld [vmem:[%s8 + $0x30] sm:$0xff]
  %v703 = vld [vmem:[%s8 + $0x38] sm:$0xff]
  %v704 = vld [vmem:[%s8 + $0x40] sm:$0xff]
  %v705 = vld [vmem:[%s8 + $0x48] sm:$0xff]
  %v706 = vld [vmem:[%s8 + $0x50] sm:$0xff]
  %v707 = vld [vmem:[%s8 + $0x58] sm:$0xff]
  %v708 = vld [vmem:[%s8 + $0x60] sm:$0xff]
  %v709 = vld [vmem:[%s8 + $0x68] sm:$0xff]
  %v710 = vld [vmem:[%s8 + $0x70] sm:$0xff]
  %v711 = vld [vmem:[%s8 + $0x78] sm:$0xff]
  %712 = vmatprep.subr.mxu0 0.0
  %713 = vmatpush1.msra.mxu0 %v696
  %714 = vmatprep.subr.mxu0 0.0
  %715 = vmatpush1.msra.mxu0 %v697
  %716 = vmatprep.subr.mxu0 0.0
  %717 = vmatpush1.msra.mxu0 %v698
  %718 = vmatprep.subr.mxu0 0.0
  %719 = vmatpush1.msra.mxu0 %v699
  %720 = vmatprep.subr.mxu0 0.0
  %721 = vmatpush1.msra.mxu0 %v700
  %722 = vmatprep.subr.mxu0 0.0
  %723 = vmatpush1.msra.mxu0 %v701
  %724 = vmatprep.subr.mxu0 0.0
  %725 = vmatpush1.msra.mxu0 %v702
  %726 = vmatprep.subr.mxu0 0.0
  %727 = vmatpush1.msra.mxu0 %v703
  %728 = vmatprep.subr.mxu0 0.0
  %729 = vmatpush1.msra.mxu0 %v704
  %730 = vmatprep.subr.mxu0 0.0
  %731 = vmatpush1.msra.mxu0 %v705
  %732 = vmatprep.subr.mxu0 0.0
  %733 = vmatpush1.msra.mxu0 %v706
  %734 = vmatprep.subr.mxu0 0.0
  %735 = vmatpush1.msra.mxu0 %v707
  %736 = vmatprep.subr.mxu0 0.0
  %737 = vmatpush1.msra.mxu0 %v708
  %738 = vmatprep.subr.mxu0 0.0
  %739 = vmatpush1.msra.mxu0 %v709
  %740 = vmatprep.subr.mxu0 0.0
  %741 = vmatpush1.msra.mxu0 %v710
  %742 = vmatprep.subr.mxu0 0.0
  %743 = vmatpush1.msra.mxu0 %v711
  %744 = vmatprep.subr.mxu0 0.0
  %745 = vmatpush1.msra.mxu0 0.0
  %746 = vmatprep.subr.mxu0 0.0
  %747 = vmatpush1.msra.mxu0 0.0
  %748 = vmatprep.subr.mxu0 0.0
  %749 = vmatpush1.msra.mxu0 0.0
  %750 = vmatprep.subr.mxu0 0.0
  %751 = vmatpush1.msra.mxu0 0.0
  %752 = vmatprep.subr.mxu0 0.0
  %753 = vmatpush1.msra.mxu0 0.0
  %754 = vmatprep.subr.mxu0 0.0
  %755 = vmatpush1.msra.mxu0 0.0
  %756 = vmatprep.subr.mxu0 0.0
  %757 = vmatpush1.msra.mxu0 0.0
  %758 = vmatprep.subr.mxu0 0.0
  %759 = vmatpush1.msra.mxu0 0.0
  %760 = vmatprep.subr.mxu0 0.0
  %761 = vmatpush1.msra.mxu0 0.0
  %762 = vmatprep.subr.mxu0 0.0
  %763 = vmatpush1.msra.mxu0 0.0
  %764 = vmatprep.subr.mxu0 0.0
  %765 = vmatpush1.msra.mxu0 0.0
  %766 = vmatprep.subr.mxu0 0.0
  %767 = vmatpush1.msra.mxu0 0.0
  %768 = vmatprep.subr.mxu0 0.0
  %769 = vmatpush1.msra.mxu0 0.0
  %770 = vmatprep.subr.mxu0 0.0
  %771 = vmatpush1.msra.mxu0 0.0
  %772 = vmatprep.subr.mxu0 0.0
  %773 = vmatpush1.msra.mxu0 0.0
  %774 = vmatprep.subr.mxu0 0.0
  %775 = vmatpush1.msra.mxu0 0.0
  %776 = vmatprep.mubr.f32.mxu0 0.0
  %777 = vmatmul.mubr.f32.gmra.mrb[0].mxu0 %v680
  %v778 = vpop.f32.mrb[0].mxu0
  %v779 = vadd.f32 0.0, %v778
  %v780 = vpop.f32.mrb[0].mxu0
  %781 = vmatprep.mubr.f32.mxu0 0.0
  %782 = vmatmul.mubr.f32.gmra.mrb[0].mxu0 %v681
  %v783 = vpop.f32.mrb[0].mxu0
  %v784 = vadd.f32 0.0, %v783
  %v785 = vpop.f32.mrb[0].mxu0
  %786 = vmatprep.mubr.f32.mxu0 0.0
  %787 = vmatmul.mubr.f32.gmra.mrb[0].mxu0 %v682
  %v788 = vpop.f32.mrb[0].mxu0
  %v789 = vadd.f32 0.0, %v788
  %v790 = vpop.f32.mrb[0].mxu0
  %791 = vmatprep.mubr.f32.mxu0 0.0
  %792 = vmatmul.mubr.f32.gmra.mrb[0].mxu0 %v683
  %v793 = vpop.f32.mrb[0].mxu0
  %v794 = vadd.f32 0.0, %v793
  %v795 = vpop.f32.mrb[0].mxu0
  %796 = vmatprep.mubr.f32.mxu0 0.0
  %797 = vmatmul.mubr.f32.gmra.mrb[0].mxu0 %v684
  %v798 = vpop.f32.mrb[0].mxu0
  %v799 = vadd.f32 0.0, %v798
  %v800 = vpop.f32.mrb[0].mxu0
  %801 = vmatprep.mubr.f32.mxu0 0.0
  %802 = vmatmul.mubr.f32.gmra.mrb[0].mxu0 %v685
  %v803 = vpop.f32.mrb[0].mxu0
  %v804 = vadd.f32 0.0, %v803
  %v805 = vpop.f32.mrb[0].mxu0
  %806 = vmatprep.mubr.f32.mxu0 0.0
  %807 = vmatmul.mubr.f32.gmra.mrb[0].mxu0 %v686
  %v808 = vpop.f32.mrb[0].mxu0
  %v809 = vadd.f32 0.0, %v808
  %v810 = vpop.f32.mrb[0].mxu0
  %811 = vmatprep.mubr.f32.mxu0 0.0
  %812 = vmatmul.mubr.f32.gmra.mrb[0].mxu0 %v687
  %v813 = vpop.f32.mrb[0].mxu0
  %v814 = vadd.f32 0.0, %v813
  %v815 = vpop.f32.mrb[0].mxu0
  %816 = vmatprep.mubr.f32.mxu0 0.0
  %817 = vmatmul.mubr.f32.gmra.mrb[0].mxu0 %v688
  %v818 = vpop.f32.mrb[0].mxu0
  %v819 = vadd.f32 0.0, %v818
  %v820 = vpop.f32.mrb[0].mxu0
  %821 = vmatprep.mubr.f32.mxu0 0.0
  %822 = vmatmul.mubr.f32.gmra.mrb[0].mxu0 %v689
  %v823 = vpop.f32.mrb[0].mxu0
  %v824 = vadd.f32 0.0, %v823
  %v825 = vpop.f32.mrb[0].mxu0
  %826 = vmatprep.mubr.f32.mxu0 0.0
  %827 = vmatmul.mubr.f32.gmra.mrb[0].mxu0 %v690
  %v828 = vpop.f32.mrb[0].mxu0
  %v829 = vadd.f32 0.0, %v828
  %v830 = vpop.f32.mrb[0].mxu0
  %831 = vmatprep.mubr.f32.mxu0 0.0
  %832 = vmatmul.mubr.f32.gmra.mrb[0].mxu0 %v691
  %v833 = vpop.f32.mrb[0].mxu0
  %v834 = vadd.f32 0.0, %v833
  %v835 = vpop.f32.mrb[0].mxu0
  %836 = vmatprep.mubr.f32.mxu0 0.0
  %837 = vmatmul.mubr.f32.gmra.mrb[0].mxu0 %v692
  %v838 = vpop.f32.mrb[0].mxu0
  %v839 = vadd.f32 0.0, %v838
  %v840 = vpop.f32.mrb[0].mxu0
  %841 = vmatprep.mubr.f32.mxu0 0.0
  %842 = vmatmul.mubr.f32.gmra.mrb[0].mxu0 %v693
  %v843 = vpop.f32.mrb[0].mxu0
  %v844 = vadd.f32 0.0, %v843
  %v845 = vpop.f32.mrb[0].mxu0
  %846 = vmatprep.mubr.f32.mxu0 0.0
  %847 = vmatmul.mubr.f32.gmra.mrb[0].mxu0 %v694
  %v848 = vpop.f32.mrb[0].mxu0
  %v849 = vadd.f32 0.0, %v848
  %v850 = vpop.f32.mrb[0].mxu0
  %851 = vmatprep.mubr.f32.mxu0 0.0
  %852 = vmatmul.mubr.f32.gmra.mrb[0].mxu0 %v695
  %v853 = vpop.f32.mrb[0].mxu0
  %v854 = vadd.f32 0.0, %v853
  %v855 = vpop.f32.mrb[0].mxu0
  %856 = vdwg.mxu0
  %v857 = vmul.f32 %v779, 0.25
  %v858 = vmul.f32 %v784, 0.25
  %v859 = vmul.f32 %v789, 0.25
  %v860 = vmul.f32 %v794, 0.25
  %v861 = vmul.f32 %v799, 0.25
  %v862 = vmul.f32 %v804, 0.25
  %v863 = vmul.f32 %v809, 0.25
  %v864 = vmul.f32 %v814, 0.25
  %v865 = vmul.f32 %v819, 0.25
  %v866 = vmul.f32 %v824, 0.25
  %v867 = vmul.f32 %v829, 0.25
  %v868 = vmul.f32 %v834, 0.25
  %v869 = vmul.f32 %v839, 0.25
  %v870 = vmul.f32 %v844, 0.25
  %v871 = vmul.f32 %v849, 0.25
  %v872 = vmul.f32 %v854, 0.25
  %v873 = vlaneseq
  %v874 = vshrl.u32 %v873, 7
  %v875 = vsub.s32 0, %v874
  %v876 = vrot.slane %v54, %v875
  %878 = vbcast.lane.b32.xlu0 %v876, 256
  %v879 = vpop.permute.xlu0 %878
  %s881 = sor.u32 256, 8
  %882 = vbcast.lane.b32.xlu0 %v876, %s881
  %v883 = vpop.permute.xlu0 %882
  %v884 = vlaneseq
  %v885 = vshrl.u32 %v884, 7
  %v886 = vsub.s32 1, %v885
  %v887 = vrot.slane %v54, %v886
  %889 = vbcast.lane.b32.xlu0 %v887, 256
  %v890 = vpop.permute.xlu0 %889
  %s892 = sor.u32 256, 8
  %893 = vbcast.lane.b32.xlu0 %v887, %s892
  %v894 = vpop.permute.xlu0 %893
  %v895 = vlaneseq
  %v896 = vshrl.u32 %v895, 7
  %v897 = vsub.s32 2, %v896
  %v898 = vrot.slane %v54, %v897
  %900 = vbcast.lane.b32.xlu0 %v898, 256
  %v901 = vpop.permute.xlu0 %900
  %s903 = sor.u32 256, 8
  %904 = vbcast.lane.b32.xlu0 %v898, %s903
  %v905 = vpop.permute.xlu0 %904
  %v906 = vlaneseq
  %v907 = vshrl.u32 %v906, 7
  %v908 = vsub.s32 3, %v907
  %v909 = vrot.slane %v54, %v908
  %911 = vbcast.lane.b32.xlu0 %v909, 256
  %v912 = vpop.permute.xlu0 %911
  %s914 = sor.u32 256, 8
  %915 = vbcast.lane.b32.xlu0 %v909, %s914
  %v916 = vpop.permute.xlu0 %915
  %v917 = vlaneseq
  %v918 = vshrl.u32 %v917, 7
  %v919 = vsub.s32 4, %v918
  %v920 = vrot.slane %v54, %v919
  %922 = vbcast.lane.b32.xlu0 %v920, 256
  %v923 = vpop.permute.xlu0 %922
  %s925 = sor.u32 256, 8
  %926 = vbcast.lane.b32.xlu0 %v920, %s925
  %v927 = vpop.permute.xlu0 %926
  %v928 = vlaneseq
  %v929 = vshrl.u32 %v928, 7
  %v930 = vsub.s32 5, %v929
  %v931 = vrot.slane %v54, %v930
  %933 = vbcast.lane.b32.xlu0 %v931, 256
  %v934 = vpop.permute.xlu0 %933
  %s936 = sor.u32 256, 8
  %937 = vbcast.lane.b32.xlu0 %v931, %s936
  %v938 = vpop.permute.xlu0 %937
  %v939 = vlaneseq
  %v940 = vshrl.u32 %v939, 7
  %v941 = vsub.s32 6, %v940
  %v942 = vrot.slane %v54, %v941
  %944 = vbcast.lane.b32.xlu0 %v942, 256
  %v945 = vpop.permute.xlu0 %944
  %s947 = sor.u32 256, 8
  %948 = vbcast.lane.b32.xlu0 %v942, %s947
  %v949 = vpop.permute.xlu0 %948
  %v950 = vlaneseq
  %v951 = vshrl.u32 %v950, 7
  %v952 = vsub.s32 7, %v951
  %v953 = vrot.slane %v54, %v952
  %955 = vbcast.lane.b32.xlu0 %v953, 256
  %v956 = vpop.permute.xlu0 %955
  %s958 = sor.u32 256, 8
  %959 = vbcast.lane.b32.xlu0 %v953, %s958
  %v960 = vpop.permute.xlu0 %959
  %vm961 = vcmp.gt.f32.partialorder %v879, 0.0
  %vm962 = vcmp.gt.f32.partialorder %v883, 0.0
  %vm963 = vcmp.gt.f32.partialorder %v890, 0.0
  %vm964 = vcmp.gt.f32.partialorder %v894, 0.0
  %vm965 = vcmp.gt.f32.partialorder %v901, 0.0
  %vm966 = vcmp.gt.f32.partialorder %v905, 0.0
  %vm967 = vcmp.gt.f32.partialorder %v912, 0.0
  %vm968 = vcmp.gt.f32.partialorder %v916, 0.0
  %vm969 = vcmp.gt.f32.partialorder %v923, 0.0
  %vm970 = vcmp.gt.f32.partialorder %v927, 0.0
  %vm971 = vcmp.gt.f32.partialorder %v934, 0.0
  %vm972 = vcmp.gt.f32.partialorder %v938, 0.0
  %vm973 = vcmp.gt.f32.partialorder %v945, 0.0
  %vm974 = vcmp.gt.f32.partialorder %v949, 0.0
  %vm975 = vcmp.gt.f32.partialorder %v956, 0.0
  %vm976 = vcmp.gt.f32.partialorder %v960, 0.0
  %v977 = vsel %vm961, 1, 0
  %v978 = vsel %vm962, 1, 0
  %v979 = vsel %vm963, 1, 0
  %v980 = vsel %vm964, 1, 0
  %v981 = vsel %vm965, 1, 0
  %v982 = vsel %vm966, 1, 0
  %v983 = vsel %vm967, 1, 0
  %v984 = vsel %vm968, 1, 0
  %v985 = vsel %vm969, 1, 0
  %v986 = vsel %vm970, 1, 0
  %v987 = vsel %vm971, 1, 0
  %v988 = vsel %vm972, 1, 0
  %v989 = vsel %vm973, 1, 0
  %v990 = vsel %vm974, 1, 0
  %v991 = vsel %vm975, 1, 0
  %v992 = vsel %vm976, 1, 0
  %vm993 = vcmp.eq.s32.totalorder %v977, 1
  %vm994 = vcmp.eq.s32.totalorder %v978, 1
  %vm995 = vcmp.eq.s32.totalorder %v979, 1
  %vm996 = vcmp.eq.s32.totalorder %v980, 1
  %vm997 = vcmp.eq.s32.totalorder %v981, 1
  %vm998 = vcmp.eq.s32.totalorder %v982, 1
  %vm999 = vcmp.eq.s32.totalorder %v983, 1
  %vm1000 = vcmp.eq.s32.totalorder %v984, 1
  %vm1001 = vcmp.eq.s32.totalorder %v985, 1
  %vm1002 = vcmp.eq.s32.totalorder %v986, 1
  %vm1003 = vcmp.eq.s32.totalorder %v987, 1
  %vm1004 = vcmp.eq.s32.totalorder %v988, 1
  %vm1005 = vcmp.eq.s32.totalorder %v989, 1
  %vm1006 = vcmp.eq.s32.totalorder %v990, 1
  %vm1007 = vcmp.eq.s32.totalorder %v991, 1
  %vm1008 = vcmp.eq.s32.totalorder %v992, 1
  %v1009 = vsel %vm993, -1e+10, %v857
  %v1010 = vsel %vm994, -1e+10, %v858
  %v1011 = vsel %vm995, -1e+10, %v859
  %v1012 = vsel %vm996, -1e+10, %v860
  %v1013 = vsel %vm997, -1e+10, %v861
  %v1014 = vsel %vm998, -1e+10, %v862
  %v1015 = vsel %vm999, -1e+10, %v863
  %v1016 = vsel %vm1000, -1e+10, %v864
  %v1017 = vsel %vm1001, -1e+10, %v865
  %v1018 = vsel %vm1002, -1e+10, %v866
  %v1019 = vsel %vm1003, -1e+10, %v867
  %v1020 = vsel %vm1004, -1e+10, %v868
  %v1021 = vsel %vm1005, -1e+10, %v869
  %v1022 = vsel %vm1006, -1e+10, %v870
  %v1023 = vsel %vm1007, -1e+10, %v871
  %v1024 = vsel %vm1008, -1e+10, %v872
  %vm1025 = vcmask 64512
  %v1026 = vsel %vm1025, %v1009, -inf
  %v1027 = vsel %vm1025, %v1010, -inf
  %v1028 = vmax.f32 %v1026, %v1027
  %v1029 = vrot.slane %v1028, 4
  %v1030 = vmax.f32 %v1028, %v1029
  %v1031 = vrot.slane %v1030, 2
  %v1032 = vmax.f32 %v1030, %v1031
  %v1033 = vrot.slane %v1032, 1
  %v1034 = vmax.f32 %v1032, %v1033
  %v1035 = vsel %vm1025, %v1011, -inf
  %v1036 = vsel %vm1025, %v1012, -inf
  %v1037 = vmax.f32 %v1035, %v1036
  %v1038 = vrot.slane %v1037, 4
  %v1039 = vmax.f32 %v1037, %v1038
  %v1040 = vrot.slane %v1039, 2
  %v1041 = vmax.f32 %v1039, %v1040
  %v1042 = vrot.slane %v1041, 1
  %v1043 = vmax.f32 %v1041, %v1042
  %v1044 = vsel %vm1025, %v1013, -inf
  %v1045 = vsel %vm1025, %v1014, -inf
  %v1046 = vmax.f32 %v1044, %v1045
  %v1047 = vrot.slane %v1046, 4
  %v1048 = vmax.f32 %v1046, %v1047
  %v1049 = vrot.slane %v1048, 2
  %v1050 = vmax.f32 %v1048, %v1049
  %v1051 = vrot.slane %v1050, 1
  %v1052 = vmax.f32 %v1050, %v1051
  %v1053 = vsel %vm1025, %v1015, -inf
  %v1054 = vsel %vm1025, %v1016, -inf
  %v1055 = vmax.f32 %v1053, %v1054
  %v1056 = vrot.slane %v1055, 4
  %v1057 = vmax.f32 %v1055, %v1056
  %v1058 = vrot.slane %v1057, 2
  %v1059 = vmax.f32 %v1057, %v1058
  %v1060 = vrot.slane %v1059, 1
  %v1061 = vmax.f32 %v1059, %v1060
  %v1062 = vsel %vm1025, %v1017, -inf
  %v1063 = vsel %vm1025, %v1018, -inf
  %v1064 = vmax.f32 %v1062, %v1063
  %v1065 = vrot.slane %v1064, 4
  %v1066 = vmax.f32 %v1064, %v1065
  %v1067 = vrot.slane %v1066, 2
  %v1068 = vmax.f32 %v1066, %v1067
  %v1069 = vrot.slane %v1068, 1
  %v1070 = vmax.f32 %v1068, %v1069
  %v1071 = vsel %vm1025, %v1019, -inf
  %v1072 = vsel %vm1025, %v1020, -inf
  %v1073 = vmax.f32 %v1071, %v1072
  %v1074 = vrot.slane %v1073, 4
  %v1075 = vmax.f32 %v1073, %v1074
  %v1076 = vrot.slane %v1075, 2
  %v1077 = vmax.f32 %v1075, %v1076
  %v1078 = vrot.slane %v1077, 1
  %v1079 = vmax.f32 %v1077, %v1078
  %v1080 = vsel %vm1025, %v1021, -inf
  %v1081 = vsel %vm1025, %v1022, -inf
  %v1082 = vmax.f32 %v1080, %v1081
  %v1083 = vrot.slane %v1082, 4
  %v1084 = vmax.f32 %v1082, %v1083
  %v1085 = vrot.slane %v1084, 2
  %v1086 = vmax.f32 %v1084, %v1085
  %v1087 = vrot.slane %v1086, 1
  %v1088 = vmax.f32 %v1086, %v1087
  %v1089 = vsel %vm1025, %v1023, -inf
  %v1090 = vsel %vm1025, %v1024, -inf
  %v1091 = vmax.f32 %v1089, %v1090
  %v1092 = vrot.slane %v1091, 4
  %v1093 = vmax.f32 %v1091, %v1092
  %v1094 = vrot.slane %v1093, 2
  %v1095 = vmax.f32 %v1093, %v1094
  %v1096 = vrot.slane %v1095, 1
  %v1097 = vmax.f32 %v1095, %v1096
  %v1098 = vsub.f32 %v1009, %v1034
  %v1099 = vsub.f32 %v1010, %v1034
  %v1100 = vsub.f32 %v1011, %v1043
  %v1101 = vsub.f32 %v1012, %v1043
  %v1102 = vsub.f32 %v1013, %v1052
  %v1103 = vsub.f32 %v1014, %v1052
  %v1104 = vsub.f32 %v1015, %v1061
  %v1105 = vsub.f32 %v1016, %v1061
  %v1106 = vsub.f32 %v1017, %v1070
  %v1107 = vsub.f32 %v1018, %v1070
  %v1108 = vsub.f32 %v1019, %v1079
  %v1109 = vsub.f32 %v1020, %v1079
  %v1110 = vsub.f32 %v1021, %v1088
  %v1111 = vsub.f32 %v1022, %v1088
  %v1112 = vsub.f32 %v1023, %v1097
  %v1113 = vsub.f32 %v1024, %v1097
  %v1114 = vmul.f32 %v1098, 1.442695
  %v1115 = vpow.pop %v1114
  %v1116 = vmul.f32 %v1099, 1.442695
  %v1117 = vpow.pop %v1116
  %v1118 = vmul.f32 %v1100, 1.442695
  %v1119 = vpow.pop %v1118
  %v1120 = vmul.f32 %v1101, 1.442695
  %v1121 = vpow.pop %v1120
  %v1122 = vmul.f32 %v1102, 1.442695
  %v1123 = vpow.pop %v1122
  %v1124 = vmul.f32 %v1103, 1.442695
  %v1125 = vpow.pop %v1124
  %v1126 = vmul.f32 %v1104, 1.442695
  %v1127 = vpow.pop %v1126
  %v1128 = vmul.f32 %v1105, 1.442695
  %v1129 = vpow.pop %v1128
  %v1130 = vmul.f32 %v1106, 1.442695
  %v1131 = vpow.pop %v1130
  %v1132 = vmul.f32 %v1107, 1.442695
  %v1133 = vpow.pop %v1132
  %v1134 = vmul.f32 %v1108, 1.442695
  %v1135 = vpow.pop %v1134
  %v1136 = vmul.f32 %v1109, 1.442695
  %v1137 = vpow.pop %v1136
  %v1138 = vmul.f32 %v1110, 1.442695
  %v1139 = vpow.pop %v1138
  %v1140 = vmul.f32 %v1111, 1.442695
  %v1141 = vpow.pop %v1140
  %v1142 = vmul.f32 %v1112, 1.442695
  %v1143 = vpow.pop %v1142
  %v1144 = vmul.f32 %v1113, 1.442695
  %v1145 = vpow.pop %v1144
  %v1146 = vsel %vm1025, %v1115, 0.0
  %v1147 = vsel %vm1025, %v1117, 0.0
  %v1148 = vadd.f32 %v1146, %v1147
  %v1149 = vrot.slane %v1148, 4
  %v1150 = vadd.f32 %v1148, %v1149
  %v1151 = vrot.slane %v1150, 2
  %v1152 = vadd.f32 %v1150, %v1151
  %v1153 = vrot.slane %v1152, 1
  %v1154 = vadd.f32 %v1152, %v1153
  %v1155 = vsel %vm1025, %v1119, 0.0
  %v1156 = vsel %vm1025, %v1121, 0.0
  %v1157 = vadd.f32 %v1155, %v1156
  %v1158 = vrot.slane %v1157, 4
  %v1159 = vadd.f32 %v1157, %v1158
  %v1160 = vrot.slane %v1159, 2
  %v1161 = vadd.f32 %v1159, %v1160
  %v1162 = vrot.slane %v1161, 1
  %v1163 = vadd.f32 %v1161, %v1162
  %v1164 = vsel %vm1025, %v1123, 0.0
  %v1165 = vsel %vm1025, %v1125, 0.0
  %v1166 = vadd.f32 %v1164, %v1165
  %v1167 = vrot.slane %v1166, 4
  %v1168 = vadd.f32 %v1166, %v1167
  %v1169 = vrot.slane %v1168, 2
  %v1170 = vadd.f32 %v1168, %v1169
  %v1171 = vrot.slane %v1170, 1
  %v1172 = vadd.f32 %v1170, %v1171
  %v1173 = vsel %vm1025, %v1127, 0.0
  %v1174 = vsel %vm1025, %v1129, 0.0
  %v1175 = vadd.f32 %v1173, %v1174
  %v1176 = vrot.slane %v1175, 4
  %v1177 = vadd.f32 %v1175, %v1176
  %v1178 = vrot.slane %v1177, 2
  %v1179 = vadd.f32 %v1177, %v1178
  %v1180 = vrot.slane %v1179, 1
  %v1181 = vadd.f32 %v1179, %v1180
  %v1182 = vsel %vm1025, %v1131, 0.0
  %v1183 = vsel %vm1025, %v1133, 0.0
  %v1184 = vadd.f32 %v1182, %v1183
  %v1185 = vrot.slane %v1184, 4
  %v1186 = vadd.f32 %v1184, %v1185
  %v1187 = vrot.slane %v1186, 2
  %v1188 = vadd.f32 %v1186, %v1187
  %v1189 = vrot.slane %v1188, 1
  %v1190 = vadd.f32 %v1188, %v1189
  %v1191 = vsel %vm1025, %v1135, 0.0
  %v1192 = vsel %vm1025, %v1137, 0.0
  %v1193 = vadd.f32 %v1191, %v1192
  %v1194 = vrot.slane %v1193, 4
  %v1195 = vadd.f32 %v1193, %v1194
  %v1196 = vrot.slane %v1195, 2
  %v1197 = vadd.f32 %v1195, %v1196
  %v1198 = vrot.slane %v1197, 1
  %v1199 = vadd.f32 %v1197, %v1198
  %v1200 = vsel %vm1025, %v1139, 0.0
  %v1201 = vsel %vm1025, %v1141, 0.0
  %v1202 = vadd.f32 %v1200, %v1201
  %v1203 = vrot.slane %v1202, 4
  %v1204 = vadd.f32 %v1202, %v1203
  %v1205 = vrot.slane %v1204, 2
  %v1206 = vadd.f32 %v1204, %v1205
  %v1207 = vrot.slane %v1206, 1
  %v1208 = vadd.f32 %v1206, %v1207
  %v1209 = vsel %vm1025, %v1143, 0.0
  %v1210 = vsel %vm1025, %v1145, 0.0
  %v1211 = vadd.f32 %v1209, %v1210
  %v1212 = vrot.slane %v1211, 4
  %v1213 = vadd.f32 %v1211, %v1212
  %v1214 = vrot.slane %v1213, 2
  %v1215 = vadd.f32 %v1213, %v1214
  %v1216 = vrot.slane %v1215, 1
  %v1217 = vadd.f32 %v1215, %v1216
  %v1218 = vrcp.pop %v1154
  %v1219 = vrcp.pop %v1163
  %v1220 = vrcp.pop %v1172
  %v1221 = vrcp.pop %v1181
  %v1222 = vrcp.pop %v1190
  %v1223 = vrcp.pop %v1199
  %v1224 = vrcp.pop %v1208
  %v1225 = vrcp.pop %v1217
  %v1226 = vmul.f32 %v1115, %v1218
  %v1227 = vmul.f32 %v1117, %v1218
  %v1228 = vmul.f32 %v1119, %v1219
  %v1229 = vmul.f32 %v1121, %v1219
  %v1230 = vmul.f32 %v1123, %v1220
  %v1231 = vmul.f32 %v1125, %v1220
  %v1232 = vmul.f32 %v1127, %v1221
  %v1233 = vmul.f32 %v1129, %v1221
  %v1234 = vmul.f32 %v1131, %v1222
  %v1235 = vmul.f32 %v1133, %v1222
  %v1236 = vmul.f32 %v1135, %v1223
  %v1237 = vmul.f32 %v1137, %v1223
  %v1238 = vmul.f32 %v1139, %v1224
  %v1239 = vmul.f32 %v1141, %v1224
  %v1240 = vmul.f32 %v1143, %v1225
  %v1241 = vmul.f32 %v1145, %v1225
  %v1242 = vld [vmem:[%s9] sm:$0xff]
  %v1244 = vsel %vm1025, %v1226, 0
  %v1247 = vsel %vm1025, %v1227, 0
  %v1250 = vsel %vm1025, %v1228, 0
  %v1253 = vsel %vm1025, %v1229, 0
  %v1256 = vsel %vm1025, %v1230, 0
  %v1259 = vsel %vm1025, %v1231, 0
  %v1262 = vsel %vm1025, %v1232, 0
  %v1265 = vsel %vm1025, %v1233, 0
  %v1268 = vsel %vm1025, %v1234, 0
  %v1271 = vsel %vm1025, %v1235, 0
  %v1274 = vsel %vm1025, %v1236, 0
  %v1277 = vsel %vm1025, %v1237, 0
  %v1280 = vsel %vm1025, %v1238, 0
  %v1283 = vsel %vm1025, %v1239, 0
  %v1286 = vsel %vm1025, %v1240, 0
  %v1289 = vsel %vm1025, %v1241, 0
  %1291 = vmatprep.subr.mxu0 0.0
  %1292 = vmatpush1.msra.mxu0 %v1242
  %1293 = vmatprep.subr.mxu0 0.0
  %1294 = vmatpush1.msra.mxu0 0.0
  %1295 = vmatprep.subr.mxu0 0.0
  %1296 = vmatpush1.msra.mxu0 0.0
  %1297 = vmatprep.subr.mxu0 0.0
  %1298 = vmatpush1.msra.mxu0 0.0
  %1299 = vmatprep.subr.mxu0 0.0
  %1300 = vmatpush1.msra.mxu0 0.0
  %1301 = vmatprep.subr.mxu0 0.0
  %1302 = vmatpush1.msra.mxu0 0.0
  %1303 = vmatprep.subr.mxu0 0.0
  %1304 = vmatpush1.msra.mxu0 0.0
  %1305 = vmatprep.subr.mxu0 0.0
  %1306 = vmatpush1.msra.mxu0 0.0
  %1307 = vmatprep.subr.mxu0 0.0
  %1308 = vmatpush1.msra.mxu0 0.0
  %1309 = vmatprep.subr.mxu0 0.0
  %1310 = vmatpush1.msra.mxu0 0.0
  %1311 = vmatprep.subr.mxu0 0.0
  %1312 = vmatpush1.msra.mxu0 0.0
  %1313 = vmatprep.subr.mxu0 0.0
  %1314 = vmatpush1.msra.mxu0 0.0
  %1315 = vmatprep.subr.mxu0 0.0
  %1316 = vmatpush1.msra.mxu0 0.0
  %1317 = vmatprep.subr.mxu0 0.0
  %1318 = vmatpush1.msra.mxu0 0.0
  %1319 = vmatprep.subr.mxu0 0.0
  %1320 = vmatpush1.msra.mxu0 0.0
  %1321 = vmatprep.subr.mxu0 0.0
  %1322 = vmatpush1.msra.mxu0 0.0
  %1323 = vmatprep.subr.mxu0 0.0
  %1324 = vmatpush1.msra.mxu0 0.0
  %1325 = vmatprep.subr.mxu0 0.0
  %1326 = vmatpush1.msra.mxu0 0.0
  %1327 = vmatprep.subr.mxu0 0.0
  %1328 = vmatpush1.msra.mxu0 0.0
  %1329 = vmatprep.subr.mxu0 0.0
  %1330 = vmatpush1.msra.mxu0 0.0
  %1331 = vmatprep.subr.mxu0 0.0
  %1332 = vmatpush1.msra.mxu0 0.0
  %1333 = vmatprep.subr.mxu0 0.0
  %1334 = vmatpush1.msra.mxu0 0.0
  %1335 = vmatprep.subr.mxu0 0.0
  %1336 = vmatpush1.msra.mxu0 0.0
  %1337 = vmatprep.subr.mxu0 0.0
  %1338 = vmatpush1.msra.mxu0 0.0
  %1339 = vmatprep.subr.mxu0 0.0
  %1340 = vmatpush1.msra.mxu0 0.0
  %1341 = vmatprep.subr.mxu0 0.0
  %1342 = vmatpush1.msra.mxu0 0.0
  %1343 = vmatprep.subr.mxu0 0.0
  %1344 = vmatpush1.msra.mxu0 0.0
  %1345 = vmatprep.subr.mxu0 0.0
  %1346 = vmatpush1.msra.mxu0 0.0
  %1347 = vmatprep.subr.mxu0 0.0
  %1348 = vmatpush1.msra.mxu0 0.0
  %1349 = vmatprep.subr.mxu0 0.0
  %1350 = vmatpush1.msra.mxu0 0.0
  %1351 = vmatprep.subr.mxu0 0.0
  %1352 = vmatpush1.msra.mxu0 0.0
  %1353 = vmatprep.subr.mxu0 0.0
  %1354 = vmatpush1.msra.mxu0 0.0
  %1355 = vmatprep.mubr.f32.mxu0 0.0
  %1356 = vmatmul.mubr.f32.gmra.mrb[0].mxu0 %v1244
  %v1357 = vpop.f32.mrb[0].mxu0
  %v1358 = vadd.f32 0.0, %v1357
  %v1359 = vpop.f32.mrb[0].mxu0
  %1360 = vmatprep.mubr.f32.mxu0 0.0
  %1361 = vmatmul.mubr.f32.gmra.mrb[0].mxu0 %v1247
  %v1362 = vpop.f32.mrb[0].mxu0
  %v1363 = vadd.f32 0.0, %v1362
  %v1364 = vpop.f32.mrb[0].mxu0
  %1365 = vmatprep.mubr.f32.mxu0 0.0
  %1366 = vmatmul.mubr.f32.gmra.mrb[0].mxu0 %v1250
  %v1367 = vpop.f32.mrb[0].mxu0
  %v1368 = vadd.f32 0.0, %v1367
  %v1369 = vpop.f32.mrb[0].mxu0
  %1370 = vmatprep.mubr.f32.mxu0 0.0
  %1371 = vmatmul.mubr.f32.gmra.mrb[0].mxu0 %v1253
  %v1372 = vpop.f32.mrb[0].mxu0
  %v1373 = vadd.f32 0.0, %v1372
  %v1374 = vpop.f32.mrb[0].mxu0
  %1375 = vmatprep.mubr.f32.mxu0 0.0
  %1376 = vmatmul.mubr.f32.gmra.mrb[0].mxu0 %v1256
  %v1377 = vpop.f32.mrb[0].mxu0
  %v1378 = vadd.f32 0.0, %v1377
  %v1379 = vpop.f32.mrb[0].mxu0
  %1380 = vmatprep.mubr.f32.mxu0 0.0
  %1381 = vmatmul.mubr.f32.gmra.mrb[0].mxu0 %v1259
  %v1382 = vpop.f32.mrb[0].mxu0
  %v1383 = vadd.f32 0.0, %v1382
  %v1384 = vpop.f32.mrb[0].mxu0
  %1385 = vmatprep.mubr.f32.mxu0 0.0
  %1386 = vmatmul.mubr.f32.gmra.mrb[0].mxu0 %v1262
  %v1387 = vpop.f32.mrb[0].mxu0
  %v1388 = vadd.f32 0.0, %v1387
  %v1389 = vpop.f32.mrb[0].mxu0
  %1390 = vmatprep.mubr.f32.mxu0 0.0
  %1391 = vmatmul.mubr.f32.gmra.mrb[0].mxu0 %v1265
  %v1392 = vpop.f32.mrb[0].mxu0
  %v1393 = vadd.f32 0.0, %v1392
  %v1394 = vpop.f32.mrb[0].mxu0
  %1395 = vmatprep.mubr.f32.mxu0 0.0
  %1396 = vmatmul.mubr.f32.gmra.mrb[0].mxu0 %v1268
  %v1397 = vpop.f32.mrb[0].mxu0
  %v1398 = vadd.f32 0.0, %v1397
  %v1399 = vpop.f32.mrb[0].mxu0
  %1400 = vmatprep.mubr.f32.mxu0 0.0
  %1401 = vmatmul.mubr.f32.gmra.mrb[0].mxu0 %v1271
  %v1402 = vpop.f32.mrb[0].mxu0
  %v1403 = vadd.f32 0.0, %v1402
  %v1404 = vpop.f32.mrb[0].mxu0
  %1405 = vmatprep.mubr.f32.mxu0 0.0
  %1406 = vmatmul.mubr.f32.gmra.mrb[0].mxu0 %v1274
  %v1407 = vpop.f32.mrb[0].mxu0
  %v1408 = vadd.f32 0.0, %v1407
  %v1409 = vpop.f32.mrb[0].mxu0
  %1410 = vmatprep.mubr.f32.mxu0 0.0
  %1411 = vmatmul.mubr.f32.gmra.mrb[0].mxu0 %v1277
  %v1412 = vpop.f32.mrb[0].mxu0
  %v1413 = vadd.f32 0.0, %v1412
  %v1414 = vpop.f32.mrb[0].mxu0
  %1415 = vmatprep.mubr.f32.mxu0 0.0
  %1416 = vmatmul.mubr.f32.gmra.mrb[0].mxu0 %v1280
  %v1417 = vpop.f32.mrb[0].mxu0
  %v1418 = vadd.f32 0.0, %v1417
  %v1419 = vpop.f32.mrb[0].mxu0
  %1420 = vmatprep.mubr.f32.mxu0 0.0
  %1421 = vmatmul.mubr.f32.gmra.mrb[0].mxu0 %v1283
  %v1422 = vpop.f32.mrb[0].mxu0
  %v1423 = vadd.f32 0.0, %v1422
  %v1424 = vpop.f32.mrb[0].mxu0
  %1425 = vmatprep.mubr.f32.mxu0 0.0
  %1426 = vmatmul.mubr.f32.gmra.mrb[0].mxu0 %v1286
  %v1427 = vpop.f32.mrb[0].mxu0
  %v1428 = vadd.f32 0.0, %v1427
  %v1429 = vpop.f32.mrb[0].mxu0
  %1430 = vmatprep.mubr.f32.mxu0 0.0
  %1431 = vmatmul.mubr.f32.gmra.mrb[0].mxu0 %v1289
  %v1432 = vpop.f32.mrb[0].mxu0
  %v1433 = vadd.f32 0.0, %v1432
  %v1434 = vpop.f32.mrb[0].mxu0
  %1435 = vdwg.mxu0
  %v1436 = vmul.f32 %v1358, %v172
  %v1437 = vmul.f32 %v1363, %v178
  %v1438 = vmul.f32 %v1368, %v184
  %v1439 = vmul.f32 %v1373, %v190
  %v1440 = vmul.f32 %v1378, %v196
  %v1441 = vmul.f32 %v1383, %v202
  %v1442 = vmul.f32 %v1388, %v208
  %v1443 = vmul.f32 %v1393, %v214
  %v1444 = vmul.f32 %v1398, %v220
  %v1445 = vmul.f32 %v1403, %v226
  %v1446 = vmul.f32 %v1408, %v232
  %v1447 = vmul.f32 %v1413, %v238
  %v1448 = vmul.f32 %v1418, %v244
  %v1449 = vmul.f32 %v1423, %v250
  %v1450 = vmul.f32 %v1428, %v256
  %v1451 = vmul.f32 %v1433, %v262
  %v1452 = vadd.f32 %v1436, %v1437
  %v1453 = vrot.slane %v1452, 4
  %v1454 = vadd.f32 %v1452, %v1453
  %v1455 = vrot.slane %v1454, 2
  %v1456 = vadd.f32 %v1454, %v1455
  %v1457 = vrot.slane %v1456, 1
  %v1458 = vadd.f32 %v1456, %v1457
  %v1459 = vadd.f32 %v1438, %v1439
  %v1460 = vrot.slane %v1459, 4
  %v1461 = vadd.f32 %v1459, %v1460
  %v1462 = vrot.slane %v1461, 2
  %v1463 = vadd.f32 %v1461, %v1462
  %v1464 = vrot.slane %v1463, 1
  %v1465 = vadd.f32 %v1463, %v1464
  %v1466 = vadd.f32 %v1440, %v1441
  %v1467 = vrot.slane %v1466, 4
  %v1468 = vadd.f32 %v1466, %v1467
  %v1469 = vrot.slane %v1468, 2
  %v1470 = vadd.f32 %v1468, %v1469
  %v1471 = vrot.slane %v1470, 1
  %v1472 = vadd.f32 %v1470, %v1471
  %v1473 = vadd.f32 %v1442, %v1443
  %v1474 = vrot.slane %v1473, 4
  %v1475 = vadd.f32 %v1473, %v1474
  %v1476 = vrot.slane %v1475, 2
  %v1477 = vadd.f32 %v1475, %v1476
  %v1478 = vrot.slane %v1477, 1
  %v1479 = vadd.f32 %v1477, %v1478
  %v1480 = vadd.f32 %v1444, %v1445
  %v1481 = vrot.slane %v1480, 4
  %v1482 = vadd.f32 %v1480, %v1481
  %v1483 = vrot.slane %v1482, 2
  %v1484 = vadd.f32 %v1482, %v1483
  %v1485 = vrot.slane %v1484, 1
  %v1486 = vadd.f32 %v1484, %v1485
  %v1487 = vadd.f32 %v1446, %v1447
  %v1488 = vrot.slane %v1487, 4
  %v1489 = vadd.f32 %v1487, %v1488
  %v1490 = vrot.slane %v1489, 2
  %v1491 = vadd.f32 %v1489, %v1490
  %v1492 = vrot.slane %v1491, 1
  %v1493 = vadd.f32 %v1491, %v1492
  %v1494 = vadd.f32 %v1448, %v1449
  %v1495 = vrot.slane %v1494, 4
  %v1496 = vadd.f32 %v1494, %v1495
  %v1497 = vrot.slane %v1496, 2
  %v1498 = vadd.f32 %v1496, %v1497
  %v1499 = vrot.slane %v1498, 1
  %v1500 = vadd.f32 %v1498, %v1499
  %v1501 = vadd.f32 %v1450, %v1451
  %v1502 = vrot.slane %v1501, 4
  %v1503 = vadd.f32 %v1501, %v1502
  %v1504 = vrot.slane %v1503, 2
  %v1505 = vadd.f32 %v1503, %v1504
  %v1506 = vrot.slane %v1505, 1
  %v1507 = vadd.f32 %v1505, %v1506
  %v1508 = vld [vmem:[%s6] sm:$0xff]
  %v1509 = vld [vmem:[%s6 + $0x8] sm:$0xff]
  %v1510 = vld [vmem:[%s6 + $0x10] sm:$0xff]
  %v1511 = vld [vmem:[%s6 + $0x18] sm:$0xff]
  %v1512 = vld [vmem:[%s6 + $0x20] sm:$0xff]
  %v1513 = vld [vmem:[%s6 + $0x28] sm:$0xff]
  %v1514 = vld [vmem:[%s6 + $0x30] sm:$0xff]
  %v1515 = vld [vmem:[%s6 + $0x38] sm:$0xff]
  %v1516 = vld [vmem:[%s6 + $0x40] sm:$0xff]
  %v1517 = vld [vmem:[%s6 + $0x48] sm:$0xff]
  %v1518 = vld [vmem:[%s6 + $0x50] sm:$0xff]
  %v1519 = vld [vmem:[%s6 + $0x58] sm:$0xff]
  %v1520 = vld [vmem:[%s6 + $0x60] sm:$0xff]
  %v1521 = vld [vmem:[%s6 + $0x68] sm:$0xff]
  %v1522 = vld [vmem:[%s6 + $0x70] sm:$0xff]
  %v1523 = vld [vmem:[%s6 + $0x78] sm:$0xff]
  %vm1532 = vcmask 1041409
  %v1533 = vsel %vm1532, %v1465, %v1458
  %vm1534 = vcmask 1042434
  %v1535 = vsel %vm1534, %v1472, %v1533
  %vm1536 = vcmask 1043459
  %v1537 = vsel %vm1536, %v1479, %v1535
  %vm1538 = vcmask 1044484
  %v1539 = vsel %vm1538, %v1486, %v1537
  %vm1540 = vcmask 1045509
  %v1541 = vsel %vm1540, %v1493, %v1539
  %vm1542 = vcmask 1046534
  %v1543 = vsel %vm1542, %v1500, %v1541
  %vm1544 = vcmask 1047559
  %v1545 = vsel %vm1544, %v1507, %v1543
  %1547 = vmatprep.subr.mxu0 0.0
  %1548 = vmatpush1.msra.mxu0 %v1508
  %1549 = vmatprep.subr.mxu0 0.0
  %1550 = vmatpush1.msra.mxu0 %v1509
  %1551 = vmatprep.subr.mxu0 0.0
  %1552 = vmatpush1.msra.mxu0 %v1510
  %1553 = vmatprep.subr.mxu0 0.0
  %1554 = vmatpush1.msra.mxu0 %v1511
  %1555 = vmatprep.subr.mxu0 0.0
  %1556 = vmatpush1.msra.mxu0 %v1512
  %1557 = vmatprep.subr.mxu0 0.0
  %1558 = vmatpush1.msra.mxu0 %v1513
  %1559 = vmatprep.subr.mxu0 0.0
  %1560 = vmatpush1.msra.mxu0 %v1514
  %1561 = vmatprep.subr.mxu0 0.0
  %1562 = vmatpush1.msra.mxu0 %v1515
  %1563 = vmatprep.subr.mxu0 0.0
  %1564 = vmatpush1.msra.mxu0 %v1516
  %1565 = vmatprep.subr.mxu0 0.0
  %1566 = vmatpush1.msra.mxu0 %v1517
  %1567 = vmatprep.subr.mxu0 0.0
  %1568 = vmatpush1.msra.mxu0 %v1518
  %1569 = vmatprep.subr.mxu0 0.0
  %1570 = vmatpush1.msra.mxu0 %v1519
  %1571 = vmatprep.subr.mxu0 0.0
  %1572 = vmatpush1.msra.mxu0 %v1520
  %1573 = vmatprep.subr.mxu0 0.0
  %1574 = vmatpush1.msra.mxu0 %v1521
  %1575 = vmatprep.subr.mxu0 0.0
  %1576 = vmatpush1.msra.mxu0 %v1522
  %1577 = vmatprep.subr.mxu0 0.0
  %1578 = vmatpush1.msra.mxu0 %v1523
  %1579 = vmatprep.subr.mxu0 0.0
  %1580 = vmatpush1.msra.mxu0 0.0
  %1581 = vmatprep.subr.mxu0 0.0
  %1582 = vmatpush1.msra.mxu0 0.0
  %1583 = vmatprep.subr.mxu0 0.0
  %1584 = vmatpush1.msra.mxu0 0.0
  %1585 = vmatprep.subr.mxu0 0.0
  %1586 = vmatpush1.msra.mxu0 0.0
  %1587 = vmatprep.subr.mxu0 0.0
  %1588 = vmatpush1.msra.mxu0 0.0
  %1589 = vmatprep.subr.mxu0 0.0
  %1590 = vmatpush1.msra.mxu0 0.0
  %1591 = vmatprep.subr.mxu0 0.0
  %1592 = vmatpush1.msra.mxu0 0.0
  %1593 = vmatprep.subr.mxu0 0.0
  %1594 = vmatpush1.msra.mxu0 0.0
  %1595 = vmatprep.subr.mxu0 0.0
  %1596 = vmatpush1.msra.mxu0 0.0
  %1597 = vmatprep.subr.mxu0 0.0
  %1598 = vmatpush1.msra.mxu0 0.0
  %1599 = vmatprep.subr.mxu0 0.0
  %1600 = vmatpush1.msra.mxu0 0.0
  %1601 = vmatprep.subr.mxu0 0.0
  %1602 = vmatpush1.msra.mxu0 0.0
  %1603 = vmatprep.subr.mxu0 0.0
  %1604 = vmatpush1.msra.mxu0 0.0
  %1605 = vmatprep.subr.mxu0 0.0
  %1606 = vmatpush1.msra.mxu0 0.0
  %1607 = vmatprep.subr.mxu0 0.0
  %1608 = vmatpush1.msra.mxu0 0.0
  %1609 = vmatprep.subr.mxu0 0.0
  %1610 = vmatpush1.msra.mxu0 0.0
  %1611 = vmatprep.mubr.f32.mxu0 0.0
  %1612 = vmatmul.mubr.f32.gmra.mrb[0].mxu0 %v1545
  %v1613 = vpop.f32.mrb[0].mxu0
  %v1614 = vadd.f32 0.0, %v1613
  %v1615 = vpop.f32.mrb[0].mxu0
  %1616 = vdwg.mxu0
  %v1618 = vcombine.high %v1614, %v1614
  %v1620 = vunpack.c.l.s4 1966171168
  %v1621 = vunpack.c.0.s8 %v1620
  %v1622 = vlaneseq
  %v1623 = vshrl.u32 %v1622, 7
  %v1624 = vsub.s32 %v1621, %v1623
  %v1625 = vrot.slane %v1614, %v1624
  %v1627 = vunpack.c.l.s4 1966171168
  %v1628 = vunpack.c.0.s8 %v1627
  %v1629 = vlaneseq
  %v1630 = vshrl.u32 %v1629, 7
  %v1631 = vsub.s32 %v1628, %v1630
  %v1632 = vrot.slane %v1618, %v1631
  %v1633 = vcombine.high %v1625, %v1625
  %v1634 = vcombine.high %v1632, %v1632
  %v1636 = vunpack.c.l.s4 1966171168
  %v1637 = vunpack.c.0.s8 %v1636
  %v1638 = vlaneseq
  %v1639 = vshrl.u32 %v1638, 7
  %v1640 = vsub.s32 %v1637, %v1639
  %v1641 = vrot.slane %v1625, %v1640
  %v1643 = vunpack.c.l.s4 1966171168
  %v1644 = vunpack.c.0.s8 %v1643
  %v1645 = vlaneseq
  %v1646 = vshrl.u32 %v1645, 7
  %v1647 = vsub.s32 %v1644, %v1646
  %v1648 = vrot.slane %v1632, %v1647
  %v1650 = vunpack.c.l.s4 1966171168
  %v1651 = vunpack.c.0.s8 %v1650
  %v1652 = vlaneseq
  %v1653 = vshrl.u32 %v1652, 7
  %v1654 = vsub.s32 %v1651, %v1653
  %v1655 = vrot.slane %v1633, %v1654
  %v1657 = vunpack.c.l.s4 1966171168
  %v1658 = vunpack.c.0.s8 %v1657
  %v1659 = vlaneseq
  %v1660 = vshrl.u32 %v1659, 7
  %v1661 = vsub.s32 %v1658, %v1660
  %v1662 = vrot.slane %v1634, %v1661
  %v1663 = vcombine.high %v1641, %v1641
  %v1664 = vcombine.high %v1648, %v1648
  %v1665 = vcombine.high %v1655, %v1655
  %v1666 = vcombine.high %v1662, %v1662
  %v1667 = vlaneseq
  %v1668 = vshrl.u32 %v1667, 7
  %v1669 = vsub.s32 0, %v1668
  %v1670 = vrot.slane %v1641, %v1669
  %v1671 = vlaneseq
  %v1672 = vshrl.u32 %v1671, 7
  %v1673 = vsub.s32 0, %v1672
  %v1674 = vrot.slane %v1655, %v1673
  %v1675 = vlaneseq
  %v1676 = vshrl.u32 %v1675, 7
  %v1677 = vsub.s32 0, %v1676
  %v1678 = vrot.slane %v1663, %v1677
  %v1679 = vlaneseq
  %v1680 = vshrl.u32 %v1679, 7
  %v1681 = vsub.s32 0, %v1680
  %v1682 = vrot.slane %v1665, %v1681
  %v1683 = vlaneseq
  %v1684 = vshrl.u32 %v1683, 7
  %v1685 = vsub.s32 0, %v1684
  %v1686 = vrot.slane %v1648, %v1685
  %v1687 = vlaneseq
  %v1688 = vshrl.u32 %v1687, 7
  %v1689 = vsub.s32 0, %v1688
  %v1690 = vrot.slane %v1662, %v1689
  %v1691 = vlaneseq
  %v1692 = vshrl.u32 %v1691, 7
  %v1693 = vsub.s32 0, %v1692
  %v1694 = vrot.slane %v1664, %v1693
  %v1695 = vlaneseq
  %v1696 = vshrl.u32 %v1695, 7
  %v1697 = vsub.s32 0, %v1696
  %v1698 = vrot.slane %v1666, %v1697
  %v1707 = vmul.f32 %v331, %v1670
  %v1708 = vmul.f32 %v336, %v1670
  %v1709 = vmul.f32 %v341, %v1674
  %v1710 = vmul.f32 %v346, %v1674
  %v1711 = vmul.f32 %v351, %v1678
  %v1712 = vmul.f32 %v356, %v1678
  %v1713 = vmul.f32 %v361, %v1682
  %v1714 = vmul.f32 %v366, %v1682
  %v1715 = vmul.f32 %v371, %v1686
  %v1716 = vmul.f32 %v376, %v1686
  %v1717 = vmul.f32 %v381, %v1690
  %v1718 = vmul.f32 %v386, %v1690
  %v1719 = vmul.f32 %v391, %v1694
  %v1720 = vmul.f32 %v396, %v1694
  %v1721 = vmul.f32 %v401, %v1698
  %v1722 = vmul.f32 %v406, %v1698
  %1723 = vadd.xlane.f32.xlu0 %v1707
  %v1724 = vpop.xlane.xlu0 %1723
  %1725 = vadd.xlane.f32.xlu0 %v1708
  %v1726 = vpop.xlane.xlu0 %1725
  %1727 = vadd.xlane.f32.xlu0 %v1709
  %v1728 = vpop.xlane.xlu0 %1727
  %1729 = vadd.xlane.f32.xlu0 %v1710
  %v1730 = vpop.xlane.xlu0 %1729
  %1731 = vadd.xlane.f32.xlu0 %v1711
  %v1732 = vpop.xlane.xlu0 %1731
  %1733 = vadd.xlane.f32.xlu0 %v1712
  %v1734 = vpop.xlane.xlu0 %1733
  %1735 = vadd.xlane.f32.xlu0 %v1713
  %v1736 = vpop.xlane.xlu0 %1735
  %1737 = vadd.xlane.f32.xlu0 %v1714
  %v1738 = vpop.xlane.xlu0 %1737
  %1739 = vadd.xlane.f32.xlu0 %v1715
  %v1740 = vpop.xlane.xlu0 %1739
  %1741 = vadd.xlane.f32.xlu0 %v1716
  %v1742 = vpop.xlane.xlu0 %1741
  %1743 = vadd.xlane.f32.xlu0 %v1717
  %v1744 = vpop.xlane.xlu0 %1743
  %1745 = vadd.xlane.f32.xlu0 %v1718
  %v1746 = vpop.xlane.xlu0 %1745
  %1747 = vadd.xlane.f32.xlu0 %v1719
  %v1748 = vpop.xlane.xlu0 %1747
  %1749 = vadd.xlane.f32.xlu0 %v1720
  %v1750 = vpop.xlane.xlu0 %1749
  %1751 = vadd.xlane.f32.xlu0 %v1721
  %v1752 = vpop.xlane.xlu0 %1751
  %1753 = vadd.xlane.f32.xlu0 %v1722
  %v1754 = vpop.xlane.xlu0 %1753
  %v1755 = vmul.f32 %v1724, 0.088388346
  %v1756 = vmul.f32 %v1726, 0.088388346
  %v1757 = vmul.f32 %v1728, 0.088388346
  %v1758 = vmul.f32 %v1730, 0.088388346
  %v1759 = vmul.f32 %v1732, 0.088388346
  %v1760 = vmul.f32 %v1734, 0.088388346
  %v1761 = vmul.f32 %v1736, 0.088388346
  %v1762 = vmul.f32 %v1738, 0.088388346
  %v1763 = vmul.f32 %v1740, 0.088388346
  %v1764 = vmul.f32 %v1742, 0.088388346
  %v1765 = vmul.f32 %v1744, 0.088388346
  %v1766 = vmul.f32 %v1746, 0.088388346
  %v1767 = vmul.f32 %v1748, 0.088388346
  %v1768 = vmul.f32 %v1750, 0.088388346
  %v1769 = vmul.f32 %v1752, 0.088388346
  %v1770 = vmul.f32 %v1754, 0.088388346
  %v1771 = vtanh.pop %v1755
  %v1772 = vtanh.pop %v1756
  %v1773 = vtanh.pop %v1757
  %v1774 = vtanh.pop %v1758
  %v1775 = vtanh.pop %v1759
  %v1776 = vtanh.pop %v1760
  %v1777 = vtanh.pop %v1761
  %v1778 = vtanh.pop %v1762
  %v1779 = vtanh.pop %v1763
  %v1780 = vtanh.pop %v1764
  %v1781 = vtanh.pop %v1765
  %v1782 = vtanh.pop %v1766
  %v1783 = vtanh.pop %v1767
  %v1784 = vtanh.pop %v1768
  %v1785 = vtanh.pop %v1769
  %v1786 = vtanh.pop %v1770
  %v1787 = vmul.f32 %v1771, 10.0
  %v1788 = vmul.f32 %v1772, 10.0
  %v1789 = vmul.f32 %v1773, 10.0
  %v1790 = vmul.f32 %v1774, 10.0
  %v1791 = vmul.f32 %v1775, 10.0
  %v1792 = vmul.f32 %v1776, 10.0
  %v1793 = vmul.f32 %v1777, 10.0
  %v1794 = vmul.f32 %v1778, 10.0
  %v1795 = vmul.f32 %v1779, 10.0
  %v1796 = vmul.f32 %v1780, 10.0
  %v1797 = vmul.f32 %v1781, 10.0
  %v1798 = vmul.f32 %v1782, 10.0
  %v1799 = vmul.f32 %v1783, 10.0
  %v1800 = vmul.f32 %v1784, 10.0
  %v1801 = vmul.f32 %v1785, 10.0
  %v1802 = vmul.f32 %v1786, 10.0
  %vm1803 = vcmp.gt.f32.partialorder %v54, 0.0
  %v1820 = vlaneseq
  %v1821 = vand.u32 %v1820, 127
  %v1822 = vlaneseq
  %v1823 = vshrl.u32 %v1822, 7
  %v1824 = vsub.s32 %v1821, %v1823
  %v1825 = vrot.slane %v1787, %v1824
  %v1826 = vadd.s32 %v1821, 4294967288
  %v1827 = vlaneseq
  %v1828 = vshrl.u32 %v1827, 7
  %v1829 = vsub.s32 %v1826, %v1828
  %v1830 = vrot.slane %v1788, %v1829
  %vm1831 = vcmask 130112
  %v1832 = vsel %vm1831, %v1830, %v1825
  %v1833 = vlaneseq
  %v1834 = vshrl.u32 %v1833, 7
  %v1835 = vsub.s32 %v1821, %v1834
  %v1836 = vrot.slane %v1789, %v1835
  %v1837 = vlaneseq
  %v1838 = vshrl.u32 %v1837, 7
  %v1839 = vsub.s32 %v1826, %v1838
  %v1840 = vrot.slane %v1790, %v1839
  %v1841 = vsel %vm1831, %v1840, %v1836
  %v1842 = vlaneseq
  %v1843 = vshrl.u32 %v1842, 7
  %v1844 = vsub.s32 %v1821, %v1843
  %v1845 = vrot.slane %v1791, %v1844
  %v1846 = vlaneseq
  %v1847 = vshrl.u32 %v1846, 7
  %v1848 = vsub.s32 %v1826, %v1847
  %v1849 = vrot.slane %v1792, %v1848
  %v1850 = vsel %vm1831, %v1849, %v1845
  %v1851 = vlaneseq
  %v1852 = vshrl.u32 %v1851, 7
  %v1853 = vsub.s32 %v1821, %v1852
  %v1854 = vrot.slane %v1793, %v1853
  %v1855 = vlaneseq
  %v1856 = vshrl.u32 %v1855, 7
  %v1857 = vsub.s32 %v1826, %v1856
  %v1858 = vrot.slane %v1794, %v1857
  %v1859 = vsel %vm1831, %v1858, %v1854
  %v1860 = vlaneseq
  %v1861 = vshrl.u32 %v1860, 7
  %v1862 = vsub.s32 %v1821, %v1861
  %v1863 = vrot.slane %v1795, %v1862
  %v1864 = vlaneseq
  %v1865 = vshrl.u32 %v1864, 7
  %v1866 = vsub.s32 %v1826, %v1865
  %v1867 = vrot.slane %v1796, %v1866
  %v1868 = vsel %vm1831, %v1867, %v1863
  %v1869 = vlaneseq
  %v1870 = vshrl.u32 %v1869, 7
  %v1871 = vsub.s32 %v1821, %v1870
  %v1872 = vrot.slane %v1797, %v1871
  %v1873 = vlaneseq
  %v1874 = vshrl.u32 %v1873, 7
  %v1875 = vsub.s32 %v1826, %v1874
  %v1876 = vrot.slane %v1798, %v1875
  %v1877 = vsel %vm1831, %v1876, %v1872
  %v1878 = vlaneseq
  %v1879 = vshrl.u32 %v1878, 7
  %v1880 = vsub.s32 %v1821, %v1879
  %v1881 = vrot.slane %v1799, %v1880
  %v1882 = vlaneseq
  %v1883 = vshrl.u32 %v1882, 7
  %v1884 = vsub.s32 %v1826, %v1883
  %v1885 = vrot.slane %v1800, %v1884
  %v1886 = vsel %vm1831, %v1885, %v1881
  %v1887 = vlaneseq
  %v1888 = vshrl.u32 %v1887, 7
  %v1889 = vsub.s32 %v1821, %v1888
  %v1890 = vrot.slane %v1801, %v1889
  %v1891 = vlaneseq
  %v1892 = vshrl.u32 %v1891, 7
  %v1893 = vsub.s32 %v1826, %v1892
  %v1894 = vrot.slane %v1802, %v1893
  %v1895 = vsel %vm1831, %v1894, %v1890
  %v1896 = vsel %vm1532, %v1841, %v1832
  %v1897 = vsel %vm1534, %v1850, %v1896
  %v1898 = vsel %vm1536, %v1859, %v1897
  %v1899 = vsel %vm1538, %v1868, %v1898
  %v1900 = vsel %vm1540, %v1877, %v1899
  %v1901 = vsel %vm1542, %v1886, %v1900
  %v1902 = vsel %vm1544, %v1895, %v1901
  %v1904 = vsel %vm1803, -1e+10, %v1902
  %vm1905 = vcmask 130048
  %1906 = vst.msk [vmem:[%s10] sm:$0xff] %vm1905, %v1904
  // Predicated region
  $region42: #{decoder_step.1} parent=0 // pred_check
    _
  $region43: #{decoder_step.1} parent=0 // pred_check_branch
    %1908 = sbr.rel (0) target = $region45
  $region44: #{decoder_step.1} parent=0 // pred_region
    _
  $region45: #{decoder_step.1} parent=0 // pred_fallthru
    _
  // Predicated region
  $region46: #{decoder_step.1} parent=0 // pred_check
    _
  $region47: #{decoder_step.1} parent=0 // pred_check_branch
    %1910 = sbr.rel (0) target = $region49
  $region48: #{decoder_step.1} parent=0 // pred_region
    _
  $region49: #{decoder_step.1} parent=0 // pred_fallthru
    _

</llo_original>
